<compile_context>
chip_gen: v5e
topology: v5e:2x2
jax: 0.10.0
libtpu: 0.0.40
codegen_flags: <defaults>
</compile_context>

<pallas_src>
import functools
import math

import jax
import jax.numpy as jnp
import numpy as np
from jax import lax
from jax.experimental import pallas as pl
from jax.experimental.pallas import tpu as pltpu


_LOG_TIMESCALE = math.log(10000.0)


def _build_pe(max_len: int, d_model: int, dtype=jnp.float32) -> jnp.ndarray:
    """Registered-buffer equivalent of the torch module's `pe` (kept for parity /
    reference checks; the kernel itself recomputes pe on the fly)."""
    position = jnp.arange(max_len, dtype=jnp.float32)[:, None]          # (max_len, 1)
    embedding_index = jnp.arange(0, d_model, 2, dtype=jnp.float32)      # (ceil(d/2),)
    div_term = 1.0 / jnp.power(jnp.float32(10000.0), embedding_index / d_model)
    angles = position * div_term                                        # (max_len, ceil(d/2))
    pe = jnp.zeros((max_len, d_model), dtype=jnp.float32)
    pe = pe.at[:, 0::2].set(jnp.sin(angles))
    pe = pe.at[:, 1::2].set(jnp.cos(angles[:, : d_model // 2]))
    return pe.astype(dtype)


def _pe_apply_kernel(x_ref, o_ref, *, sign, d_model, tile_rows):
    """out = x (+/-) pe, with pe computed in-kernel (no pe stream from HBM)."""
    # Position (row) index of every sublane of this tile within the full sequence.
    base = pl.program_id(0) * tile_rows
    pos = (lax.broadcasted_iota(jnp.int32, (tile_rows, 1), 0) + base).astype(jnp.float32)

    # Per-lane inverse frequency and phase, computed on a (1, d_model) slab:
    #   lane j uses exponent 2*(j//2); odd lanes are cos == sin(angle + pi/2),
    #   so a single EUP sin per element suffices.
    lane = lax.broadcasted_iota(jnp.int32, (1, d_model), 1)
    odd = (lane & 1).astype(jnp.float32)                               # 1 on cos lanes
    pair = (lane - (lane & 1)).astype(jnp.float32)                     # 2 * (j // 2)
    inv_freq = jnp.exp(pair * (-_LOG_TIMESCALE / d_model))             # (1, d_model)
    phase = odd * (math.pi / 2.0)                                      # (1, d_model)

    angle = pos * inv_freq + phase                                     # (tile_rows, d_model)
    pe = jnp.sin(angle)

    x = x_ref[...].astype(jnp.float32)
    y = x + pe if sign > 0 else x - pe
    o_ref[...] = y.astype(o_ref.dtype)


def _pick_tile_rows(seq_len: int, d_model: int, itemsize: int,
                    target_bytes: int = 4 * 1024 * 1024, max_rows: int = 1024) -> int:
    """Multiple-of-8 row-tile size of roughly `target_bytes`, never exceeding seq."""
    row_bytes = max(d_model * itemsize, 1)
    tm = (target_bytes // row_bytes) // 8 * 8
    tm = max(8, min(tm, max_rows))
    tm = min(tm, (seq_len // 8) * 8)
    return max(tm, 8)


def _apply_position_encoding(x: jnp.ndarray, *, max_len: int, sign: float) -> jnp.ndarray:
    if x.ndim != 2:
        raise ValueError(f"expected (seq_len, d_model), got shape {x.shape}")
    seq_len, d_model = x.shape
    if seq_len > max_len:
        raise ValueError(f"seq_len={seq_len} exceeds max_len={max_len}")

    out_shape = jax.ShapeDtypeStruct((seq_len, d_model), x.dtype)

    if seq_len >= 8:
        # Tiled, software-pipelined path (BlockSpec double-buffers the DMA).
        tm = _pick_tile_rows(seq_len, d_model, x.dtype.itemsize)
        kernel = functools.partial(_pe_apply_kernel, sign=sign,
                                   d_model=d_model, tile_rows=tm)
        return pl.pallas_call(
            kernel,
            out_shape=out_shape,
            grid=(pl.cdiv(seq_len, tm),),
            in_specs=[pl.BlockSpec((tm, d_model), lambda i: (i, 0))],
            out_specs=pl.BlockSpec((tm, d_model), lambda i: (i, 0)),
            compiler_params=pltpu.CompilerParams(
                dimension_semantics=("parallel",),   # v7x: shard row tiles over 2 TCs
            ),
        )(x)

    # Tiny sequences (< 8 rows): single full-extent block (block shape equals
    # the full array dims, so it is exempt from the (8,128) block rule).
    kernel = functools.partial(_pe_apply_kernel, sign=sign,
                               d_model=d_model, tile_rows=seq_len)
    return pl.pallas_call(
        kernel,
        out_shape=out_shape,
        grid=(1,),
        in_specs=[pl.BlockSpec((seq_len, d_model), lambda i: (0, 0))],
        out_specs=pl.BlockSpec((seq_len, d_model), lambda i: (0, 0)),
        compiler_params=pltpu.CompilerParams(dimension_semantics=("arbitrary",)),
    )(x)


class PositionEncodingPallas:
    """JAX/Pallas port of the PyTorch PositionEncoding module."""

    def __init__(self, d_model: int = 2, max_len: int = 6, dtype=jnp.float32):
        self.d_model = d_model
        self.max_len = max_len
        # register_buffer equivalent (reference / inspection only; the kernel
        # regenerates pe on the fly so it never has to be streamed from HBM).
        self.pe = _build_pe(max_len, d_model, dtype)

    def forward(self, word_embeddings: jnp.ndarray) -> jnp.ndarray:
        return _apply_position_encoding(word_embeddings, max_len=self.max_len, sign=+1.0)

    __call__ = forward

    def return_positions(self, embedded_positions: jnp.ndarray) -> jnp.ndarray:
        return _apply_position_encoding(embedded_positions, max_len=self.max_len, sign=-1.0)


if __name__ == "__main__":
    key0, key1 = jax.random.split(jax.random.PRNGKey(0))

    # Primary demo: lane-dense (d_model multiple of 128), tiled/pipelined path.
    seq_len, d_model, max_len = 128, 128, 256
    x = jax.random.normal(key0, (seq_len, d_model), dtype=jnp.float32)
    pe_module = PositionEncodingPallas(d_model=d_model, max_len=max_len)

    out = jax.block_until_ready(pe_module(x))
    ref = x + pe_module.pe[:seq_len, :]
    np.testing.assert_allclose(np.asarray(out), np.asarray(ref), rtol=1e-5, atol=2e-5)

    # Round-trip: return_positions must invert forward.
    back = jax.block_until_ready(pe_module.return_positions(out))
    np.testing.assert_allclose(np.asarray(back), np.asarray(x), rtol=1e-5, atol=1e-5)

    # Secondary check: narrow d_model through the same tiled path.
    seq2, d2, ml2 = 8, 32, 16
    x2 = jax.random.normal(key1, (seq2, d2), dtype=jnp.float32)
    pe_module2 = PositionEncodingPallas(d_model=d2, max_len=ml2)
    out2 = jax.block_until_ready(pe_module2(x2))
    ref2 = x2 + pe_module2.pe[:seq2, :]
    np.testing.assert_allclose(np.asarray(out2), np.asarray(ref2), rtol=1e-5, atol=2e-5)

    # Module defaults (d_model=2, max_len=6): tiny-sequence fallback path.
    pe_module3 = PositionEncodingPallas()        # d_model=2, max_len=6
    x3 = jax.random.normal(jax.random.PRNGKey(2), (6, 2), dtype=jnp.float32)
    out3 = jax.block_until_ready(pe_module3(x3))
    ref3 = x3 + pe_module3.pe
    np.testing.assert_allclose(np.asarray(out3), np.asarray(ref3), rtol=1e-5, atol=2e-5)

    print("KERNEL_OK")
</pallas_src>

<mosaic_0001>
module attributes {stable_mosaic.version = 11 : i64} {
  func.func @_pe_apply_kernel(%arg0: i32, %arg1: memref<128x128xf32, #tpu.memory_space<vmem>>, %arg2: memref<128x128xf32, #tpu.memory_space<vmem>>) attributes {dimension_semantics = [#tpu.dimension_semantics<parallel>], iteration_bounds = array<i64: 1>, scalar_prefetch = 0 : i64, scratch_operands = 0 : i64, tpu.core_type = #tpu.core_type<tc>, window_params = [{transform_indices = @transform_0, window_bounds = array<i64: 128, 128>}, {transform_indices = @transform_1, window_bounds = array<i64: 128, 128>}]} {
    %c128_i32 = arith.constant 128 : i32
    %0 = arith.muli %arg0, %c128_i32 : i32
    %1 = tpu.iota {dimensions = array<i32: 0>} : vector<128x1xi32>
    %2 = vector.broadcast %0 : i32 to vector<128x1xi32>
    %3 = arith.addi %1, %2 : vector<128x1xi32>
    %4 = arith.sitofp %3 : vector<128x1xi32> to vector<128x1xf32>
    %5 = tpu.iota {dimensions = array<i32: 1>} : vector<1x128xi32>
    %c1_i32 = arith.constant 1 : i32
    %6 = vector.broadcast %c1_i32 : i32 to vector<1x128xi32>
    %7 = arith.andi %5, %6 : vector<1x128xi32>
    %8 = arith.sitofp %7 : vector<1x128xi32> to vector<1x128xf32>
    %c1_i32_0 = arith.constant 1 : i32
    %9 = vector.broadcast %c1_i32_0 : i32 to vector<1x128xi32>
    %10 = arith.andi %5, %9 : vector<1x128xi32>
    %11 = arith.subi %5, %10 : vector<1x128xi32>
    %12 = arith.sitofp %11 : vector<1x128xi32> to vector<1x128xf32>
    %cst = arith.constant -0.0719557852 : f32
    %13 = vector.broadcast %cst : f32 to vector<1x128xf32>
    %14 = arith.mulf %12, %13 : vector<1x128xf32>
    %15 = math.exp %14 : vector<1x128xf32>
    %cst_1 = arith.constant 1.57079637 : f32
    %16 = vector.broadcast %cst_1 : f32 to vector<1x128xf32>
    %17 = arith.mulf %8, %16 : vector<1x128xf32>
    %18 = vector.broadcast %4 : vector<128x1xf32> to vector<128x128xf32>
    %19 = vector.broadcast %15 : vector<1x128xf32> to vector<128x128xf32>
    %20 = arith.mulf %18, %19 : vector<128x128xf32>
    %21 = vector.broadcast %17 : vector<1x128xf32> to vector<128x128xf32>
    %22 = arith.addf %20, %21 : vector<128x128xf32>
    %23 = math.sin %22 : vector<128x128xf32>
    %c0 = arith.constant 0 : index
    %c0_2 = arith.constant 0 : index
    %24 = vector.load %arg1[%c0, %c0_2] : memref<128x128xf32, #tpu.memory_space<vmem>>, vector<128x128xf32>
    %25 = arith.addf %24, %23 : vector<128x128xf32>
    %c0_3 = arith.constant 0 : index
    %c0_4 = arith.constant 0 : index
    %26 = vector.load %arg2[%c0_3, %c0_4] : memref<128x128xf32, #tpu.memory_space<vmem>>, vector<128x128xf32>
    tpu.vector_store %arg2[%c0_3, %c0_4], %25 {strides = array<i32>} : memref<128x128xf32, #tpu.memory_space<vmem>>, vector<128x128xf32>,
    return
  }
  func.func @transform_0(%arg0: i32) -> (i32, i32) {
    %c0_i32 = arith.constant 0 : i32
    %c0_i32_0 = arith.constant 0 : i32
    return %arg0, %c0_i32 : i32, i32
  }
  func.func @transform_1(%arg0: i32) -> (i32, i32) {
    %c0_i32 = arith.constant 0 : i32
    %c0_i32_0 = arith.constant 0 : i32
    return %arg0, %c0_i32 : i32, i32
  }
}

</mosaic_0001>

<llo_original>
// kernel: tpu_custom_call.1
$region0: #{tpu_custom_call.1}
  #allocation0 [shape = 'u32[]', space=smem, size = 0x4, offset = 0x4, fixed_abs, tag = 'smem constant byte address 0x4 - core index']
  #allocation1 [shape = 'u32[72,128]{1,0:T(1,128)}', space=vmem, size = 0x9000, scoped, tag = 'internal scratch']
  %s0 = inlined_call_operand.hbm [shape: f32[128,128], index: 0, kind: input, shape index: {}]
  %s1 = inlined_call_operand.hbm [shape: f32[128,128], index: 1, kind: output, shape index: {}]
  %s2 = sld [smem:[#allocation0]]
  $region18: #{tpu_custom_call.1} parent=0
    _
  %s4 = ssub.s32 1, %s2
  %s5 = scalar_select 0, %s4, %s2
  $region1: #{tpu_custom_call.1} parent=0
    #allocation2 [shape = 'u8[65536]{0}', space=vmem, size = 0x10000, scoped, tag = 'input window, operand 0, single buffered']
    #allocation3 [shape = 's32[1]{0}', space=sflag, size = 0x4, scoped, tag = 'scoped memory for tpu_custom_call.1']
    #allocation4 [shape = 's32[1]{0}', space=sflag, size = 0x4, scoped, tag = 'scoped memory for tpu_custom_call.1']
    #allocation5 [shape = 'u8[65536]{0}', space=vmem, size = 0x10000, scoped, tag = 'output window, operand 0, single buffered']
    %6 = vsyncpa [#allocation3], 0
    %7 = vsyncpa [#allocation4], 0
    // Predicated region
    $region2: #{tpu_custom_call.1} parent=1 // pred_check
      _
    $region3: #{tpu_custom_call.1} parent=1 // pred_check_branch
      %9 = sbr.rel (0) target = $region5
    $region4: #{tpu_custom_call.1} parent=1 // pred_region
      %11 = vsyncadd [#allocation3], 0
      %s12 = sshll.u32 %s0, 4
      %s13 = int_to_ptr.hbm [resolvable:$true] %s12
      %s14 = sshll.u32 [#allocation2], 4
      %s15 = int_to_ptr.vmem [resolvable:$true] %s14
      %20 = dma.hbm_to_vmem [thread:$0]  %s13, 2048, %s15, [#allocation3], 128, 128, 8
    $region5: #{tpu_custom_call.1} parent=1 // pred_fallthru
      _
    // Predicated region
    $region6: #{tpu_custom_call.1} parent=1 // pred_check
      _
    $region7: #{tpu_custom_call.1} parent=1 // pred_check_branch
      %22 = sbr.rel (0) target = $region9
    $region8: #{tpu_custom_call.1} parent=1 // pred_region
      %24 = dma.done [#allocation3], 2048
    $region9: #{tpu_custom_call.1} parent=1 // pred_fallthru
      _
    %s25 = smul.u32 0, 128
    %v26 = vlaneseq
    %v27 = vshrl.u32 %v26, 7
    %v28 = vadd.s32 %v27, 8
    %v29 = vadd.s32 %v27, 16
    %v30 = vadd.s32 %v27, 24
    %v31 = vadd.s32 %v27, 32
    %v32 = vadd.s32 %v27, 40
    %v33 = vadd.s32 %v27, 48
    %v34 = vadd.s32 %v27, 56
    %v35 = vadd.s32 %v27, 64
    %v36 = vadd.s32 %v27, 72
    %v37 = vadd.s32 %v27, 80
    %v38 = vadd.s32 %v27, 88
    %v39 = vadd.s32 %v27, 96
    %v40 = vadd.s32 %v27, 104
    %v41 = vadd.s32 %v27, 112
    %v42 = vadd.s32 %v27, 120
    %v43 = vstv %s25
    %v44 = vadd.s32 %v27, %v43
    %v45 = vadd.s32 %v28, %v43
    %v46 = vadd.s32 %v29, %v43
    %v47 = vadd.s32 %v30, %v43
    %v48 = vadd.s32 %v31, %v43
    %v49 = vadd.s32 %v32, %v43
    %v50 = vadd.s32 %v33, %v43
    %v51 = vadd.s32 %v34, %v43
    %v52 = vadd.s32 %v35, %v43
    %v53 = vadd.s32 %v36, %v43
    %v54 = vadd.s32 %v37, %v43
    %v55 = vadd.s32 %v38, %v43
    %v56 = vadd.s32 %v39, %v43
    %v57 = vadd.s32 %v40, %v43
    %v58 = vadd.s32 %v41, %v43
    %v59 = vadd.s32 %v42, %v43
    %v60 = vcvt.s32.f32 %v44
    %v61 = vcvt.s32.f32 %v45
    %v62 = vcvt.s32.f32 %v46
    %v63 = vcvt.s32.f32 %v47
    %v64 = vcvt.s32.f32 %v48
    %v65 = vcvt.s32.f32 %v49
    %v66 = vcvt.s32.f32 %v50
    %v67 = vcvt.s32.f32 %v51
    %v68 = vcvt.s32.f32 %v52
    %v69 = vcvt.s32.f32 %v53
    %v70 = vcvt.s32.f32 %v54
    %v71 = vcvt.s32.f32 %v55
    %v72 = vcvt.s32.f32 %v56
    %v73 = vcvt.s32.f32 %v57
    %v74 = vcvt.s32.f32 %v58
    %v75 = vcvt.s32.f32 %v59
    %v76 = vlaneseq
    %v77 = vand.u32 %v76, 127
    %v78 = vand.u32 %v77, 1
    %v79 = vcvt.s32.f32 %v78
    %v80 = vsub.s32 %v77, %v78
    %v81 = vcvt.s32.f32 %v80
    %v82 = vmul.f32 %v81, -0.071955785
    %v83 = vmul.f32 %v82, 1.442695
    %v84 = vpow.pop %v83
    %v85 = vmul.f32 %v79, 1.5707964
    %v86 = vmul.f32 %v60, %v84
    %v87 = vmul.f32 %v61, %v84
    %v88 = vmul.f32 %v62, %v84
    %v89 = vmul.f32 %v63, %v84
    %v90 = vmul.f32 %v64, %v84
    %v91 = vmul.f32 %v65, %v84
    %v92 = vmul.f32 %v66, %v84
    %v93 = vmul.f32 %v67, %v84
    %v94 = vmul.f32 %v68, %v84
    %v95 = vmul.f32 %v69, %v84
    %v96 = vmul.f32 %v70, %v84
    %v97 = vmul.f32 %v71, %v84
    %v98 = vmul.f32 %v72, %v84
    %v99 = vmul.f32 %v73, %v84
    %v100 = vmul.f32 %v74, %v84
    %v101 = vmul.f32 %v75, %v84
    %v102 = vadd.f32 %v86, %v85
    %v103 = vadd.f32 %v87, %v85
    %v104 = vadd.f32 %v88, %v85
    %v105 = vadd.f32 %v89, %v85
    %v106 = vadd.f32 %v90, %v85
    %v107 = vadd.f32 %v91, %v85
    %v108 = vadd.f32 %v92, %v85
    %v109 = vadd.f32 %v93, %v85
    %v110 = vadd.f32 %v94, %v85
    %v111 = vadd.f32 %v95, %v85
    %v112 = vadd.f32 %v96, %v85
    %v113 = vadd.f32 %v97, %v85
    %v114 = vadd.f32 %v98, %v85
    %v115 = vadd.f32 %v99, %v85
    %v116 = vadd.f32 %v100, %v85
    %v117 = vadd.f32 %v101, %v85
    %v118 = vand.u32 2147483647, %v102
    %vm119 = vcmp.le.f32.partialorder %v118, 0.7853982
    %vm120 = vcmp.lt.s32.totalorder %v102, 0
    %v121 = vand.u32 %v102, 2139095040
    %v122 = vshrl.u32 %v121, 23
    %v123 = vsub.s32 %v122, 127
    %v124 = vand.u32 2147483647, %v102
    %v125 = vand.u32 %v124, 8388607
    %v126 = vor.u32 %v125, 8388608
    %v127 = vsub.s32 0, %v126
    %v128 = vadd.s32 %v123, 1
    %vm129 = vcmp.gt.s32.totalorder %v128, 0
    %v130 = vsel %vm129, %v128, 0
    %v131 = vshrl.u32 %v130, 5
    %v132 = vand.u32 %v130, 31
    %v133 = vsub.s32 32, %v132
    %v134 = vshrl.u32 683565275, %v133
    %v135 = vshll.u32 683565275, %v132
    %v136 = vshrl.u32 2475754826, %v133
    %v137 = vor.u32 %v135, %v136
    %v138 = vshll.u32 2475754826, %v132
    %v139 = vshrl.u32 2131351028, %v133
    %v140 = vor.u32 %v138, %v139
    %v141 = vshll.u32 2131351028, %v132
    %v142 = vshrl.u32 2102212464, %v133
    %v143 = vor.u32 %v141, %v142
    %v144 = vshll.u32 2102212464, %v132
    %v145 = vshrl.u32 920167782, %v133
    %v146 = vor.u32 %v144, %v145
    %v147 = vshll.u32 920167782, %v132
    %v148 = vshrl.u32 1326507024, %v133
    %v149 = vor.u32 %v147, %v148
    %vm150 = vcmp.lt.s32.totalorder %v131, 1
    %vm151 = vcmp.lt.s32.totalorder %v131, 2
    %vm152 = vcmp.lt.s32.totalorder %v131, 3
    %vm153 = vcmp.lt.s32.totalorder %v131, 4
    %v154 = vsel %vm150, %v134, %v137
    %v155 = vsel %vm153, %v143, 2102212464
    %v156 = vsel %vm152, %v140, %v155
    %v157 = vsel %vm151, %v154, %v156
    %v158 = vsel %vm150, %v137, %v140
    %v159 = vsel %vm153, %v146, 920167782
    %v160 = vsel %vm152, %v143, %v159
    %v161 = vsel %vm151, %v158, %v160
    %v162 = vsel %vm150, %v140, %v143
    %v163 = vsel %vm153, %v149, 1326507024
    %v164 = vsel %vm152, %v146, %v163
    %v165 = vsel %vm151, %v162, %v164
    %v166 = vshll.u32 %v126, 8
    %v167 = vand.u32 %v166, 65535
    %v168 = vshrl.u32 %v166, 16
    %v169 = vand.u32 %v165, 65535
    %v170 = vshrl.u32 %v165, 16
    %v171 = vmul.u32 %v167, %v169
    %v172 = vmul.u32 %v167, %v170
    %v173 = vmul.u32 %v168, %v169
    %v174 = vmul.u32 %v168, %v170
    %v175 = vshll.u32 %v172, 16
    %v176 = vshrl.u32 %v172, 16
    %v177 = vshll.u32 %v173, 16
    %v178 = vshrl.u32 %v173, 16
    %vm179 = vc.u32 %v171, %v175
    %v180 = vsel %vm179, 1, 0
    %v181 = vadd.s32 %v171, %v175
    %v182 = vadd.s32 %v174, %v180
    %vm183 = vc.u32 %v181, %v177
    %v184 = vsel %vm183, 1, 0
    %v185 = vadd.s32 %v181, %v177
    %v186 = vadd.s32 %v182, %v184
    %v187 = vadd.s32 %v186, %v176
    %v188 = vadd.s32 %v187, %v178
    %v189 = vand.u32 %v166, 65535
    %v190 = vshrl.u32 %v166, 16
    %v191 = vand.u32 %v161, 65535
    %v192 = vshrl.u32 %v161, 16
    %v193 = vmul.u32 %v189, %v191
    %v194 = vmul.u32 %v189, %v192
    %v195 = vmul.u32 %v190, %v191
    %v196 = vmul.u32 %v190, %v192
    %v197 = vshll.u32 %v194, 16
    %v198 = vshrl.u32 %v194, 16
    %v199 = vshll.u32 %v195, 16
    %v200 = vshrl.u32 %v195, 16
    %vm201 = vc.u32 %v193, %v197
    %v202 = vsel %vm201, 1, 0
    %v203 = vadd.s32 %v193, %v197
    %v204 = vadd.s32 %v196, %v202
    %vm205 = vc.u32 %v203, %v199
    %v206 = vsel %vm205, 1, 0
    %v207 = vadd.s32 %v203, %v199
    %v208 = vadd.s32 %v204, %v206
    %v209 = vadd.s32 %v208, %v198
    %v210 = vadd.s32 %v209, %v200
    %v211 = vmul.u32 %v166, %v157
    %v212 = vadd.s32 %v188, %v207
    %vm213 = vc.u32 %v188, %v207
    %v214 = vadd.s32 %v210, 1
    %v215 = vsel %vm213, %v214, %v210
    %v216 = vadd.s32 %v211, %v215
    %v217 = vadd.s32 %v216, 536870912
    %v218 = vshrl.u32 %v217, 30
    %v219 = vshll.u32 %v218, 30
    %v220 = vsub.s32 %v216, %v219
    %vm221 = vcmp.lt.s32.totalorder %v220, 0
    %v222 = vsub.s32 0, %v220
    %v223 = vsel %vm221, %v222, %v220
    %v224 = vclz %v223
    %v225 = vsub.s32 %v224, 2
    %vm226 = vcmp.gt.s32.totalorder 0, %v225
    %v227 = vsel %vm226, 0, %v225
    %v228 = vsub.s32 32, %v227
    %v229 = vshll.u32 %v220, %v227
    %v230 = vshrl.u32 %v212, %v228
    %v231 = vor.u32 %v229, %v230
    %v232 = vsub.s32 4294967266, %v227
    %v233 = vadd.s32 %v232, 127
    %v234 = vshll.u32 %v233, 23
    %v235 = vor.u32 4788187, %v234
    %v236 = vand.u32 2147483647, %v235
    %v238 = vcvt.s32.f32 %v231
    %v239 = vmul.f32 %v238, %v236
    %v240 = vxor.u32 %v239, 2147483648
    %v241 = vsel %vm120, %v240, %v239
    %v242 = vsub.s32 4, %v218
    %v243 = vsel %vm120, %v242, %v218
    %v244 = vsel %vm119, %v102, %v241
    %v245 = vsel %vm119, 0, %v243
    %v246 = vmul.f32 %v244, %v244
    %v247 = vmul.f32 %v246, -0.001358992
    %v248 = vadd.f32 %v247, 0.041655596
    %v249 = vmul.f32 %v246, %v248
    %v250 = vadd.f32 %v249, -0.4999988
    %v251 = vmul.f32 %v246, %v250
    %v252 = vadd.f32 1.0, %v251
    %v253 = vmul.f32 %v244, %v244
    %v254 = vmul.f32 %v253, -0.00019511016
    %v255 = vadd.f32 %v254, 0.008332121
    %v256 = vmul.f32 %v253, %v255
    %v257 = vadd.f32 %v256, -0.16666654
    %v258 = vmul.f32 %v253, %v257
    %v259 = vadd.f32 %v258, 1.0
    %v260 = vmul.f32 %v259, %v244
    %vm261 = vweird.f32 %v102
    %v262 = vadd.s32 %v245, 3
    %v263 = vand.u32 %v262, 3
    %vm264 = vcmp.lt.s32.totalorder %v263, 2
    %vm265 = vcmp.eq.s32.totalorder %v263, 0
    %v266 = vxor.u32 %v260, 2147483648
    %v267 = vsel %vm265, %v252, %v266
    %vm268 = vcmp.eq.s32.totalorder %v263, 2
    %v269 = vxor.u32 %v252, 2147483648
    %v270 = vsel %vm268, %v269, %v260
    %v271 = vsel %vm264, %v267, %v270
    %v272 = vsel %vm261, nan, %v271
    %v273 = vand.u32 2147483647, %v103
    %vm274 = vcmp.le.f32.partialorder %v273, 0.7853982
    %vm275 = vcmp.lt.s32.totalorder %v103, 0
    %v276 = vand.u32 %v103, 2139095040
    %v277 = vshrl.u32 %v276, 23
    %v278 = vsub.s32 %v277, 127
    %v279 = vand.u32 2147483647, %v103
    %v280 = vand.u32 %v279, 8388607
    %v281 = vor.u32 %v280, 8388608
    %v282 = vsub.s32 0, %v281
    %v283 = vadd.s32 %v278, 1
    %vm284 = vcmp.gt.s32.totalorder %v283, 0
    %v285 = vsel %vm284, %v283, 0
    %v286 = vshrl.u32 %v285, 5
    %v287 = vand.u32 %v285, 31
    %v288 = vsub.s32 32, %v287
    %v289 = vshrl.u32 683565275, %v288
    %v290 = vshll.u32 683565275, %v287
    %v291 = vshrl.u32 2475754826, %v288
    %v292 = vor.u32 %v290, %v291
    %v293 = vshll.u32 2475754826, %v287
    %v294 = vshrl.u32 2131351028, %v288
    %v295 = vor.u32 %v293, %v294
    %v296 = vshll.u32 2131351028, %v287
    %v297 = vshrl.u32 2102212464, %v288
    %v298 = vor.u32 %v296, %v297
    %v299 = vshll.u32 2102212464, %v287
    %v300 = vshrl.u32 920167782, %v288
    %v301 = vor.u32 %v299, %v300
    %v302 = vshll.u32 920167782, %v287
    %v303 = vshrl.u32 1326507024, %v288
    %v304 = vor.u32 %v302, %v303
    %vm305 = vcmp.lt.s32.totalorder %v286, 1
    %vm306 = vcmp.lt.s32.totalorder %v286, 2
    %vm307 = vcmp.lt.s32.totalorder %v286, 3
    %vm308 = vcmp.lt.s32.totalorder %v286, 4
    %v309 = vsel %vm305, %v289, %v292
    %v310 = vsel %vm308, %v298, 2102212464
    %v311 = vsel %vm307, %v295, %v310
    %v312 = vsel %vm306, %v309, %v311
    %v313 = vsel %vm305, %v292, %v295
    %v314 = vsel %vm308, %v301, 920167782
    %v315 = vsel %vm307, %v298, %v314
    %v316 = vsel %vm306, %v313, %v315
    %v317 = vsel %vm305, %v295, %v298
    %v318 = vsel %vm308, %v304, 1326507024
    %v319 = vsel %vm307, %v301, %v318
    %v320 = vsel %vm306, %v317, %v319
    %v321 = vshll.u32 %v281, 8
    %v322 = vand.u32 %v321, 65535
    %v323 = vshrl.u32 %v321, 16
    %v324 = vand.u32 %v320, 65535
    %v325 = vshrl.u32 %v320, 16
    %v326 = vmul.u32 %v322, %v324
    %v327 = vmul.u32 %v322, %v325
    %v328 = vmul.u32 %v323, %v324
    %v329 = vmul.u32 %v323, %v325
    %v330 = vshll.u32 %v327, 16
    %v331 = vshrl.u32 %v327, 16
    %v332 = vshll.u32 %v328, 16
    %v333 = vshrl.u32 %v328, 16
    %vm334 = vc.u32 %v326, %v330
    %v335 = vsel %vm334, 1, 0
    %v336 = vadd.s32 %v326, %v330
    %v337 = vadd.s32 %v329, %v335
    %vm338 = vc.u32 %v336, %v332
    %v339 = vsel %vm338, 1, 0
    %v340 = vadd.s32 %v336, %v332
    %v341 = vadd.s32 %v337, %v339
    %v342 = vadd.s32 %v341, %v331
    %v343 = vadd.s32 %v342, %v333
    %v344 = vand.u32 %v321, 65535
    %v345 = vshrl.u32 %v321, 16
    %v346 = vand.u32 %v316, 65535
    %v347 = vshrl.u32 %v316, 16
    %v348 = vmul.u32 %v344, %v346
    %v349 = vmul.u32 %v344, %v347
    %v350 = vmul.u32 %v345, %v346
    %v351 = vmul.u32 %v345, %v347
    %v352 = vshll.u32 %v349, 16
    %v353 = vshrl.u32 %v349, 16
    %v354 = vshll.u32 %v350, 16
    %v355 = vshrl.u32 %v350, 16
    %vm356 = vc.u32 %v348, %v352
    %v357 = vsel %vm356, 1, 0
    %v358 = vadd.s32 %v348, %v352
    %v359 = vadd.s32 %v351, %v357
    %vm360 = vc.u32 %v358, %v354
    %v361 = vsel %vm360, 1, 0
    %v362 = vadd.s32 %v358, %v354
    %v363 = vadd.s32 %v359, %v361
    %v364 = vadd.s32 %v363, %v353
    %v365 = vadd.s32 %v364, %v355
    %v366 = vmul.u32 %v321, %v312
    %v367 = vadd.s32 %v343, %v362
    %vm368 = vc.u32 %v343, %v362
    %v369 = vadd.s32 %v365, 1
    %v370 = vsel %vm368, %v369, %v365
    %v371 = vadd.s32 %v366, %v370
    %v372 = vadd.s32 %v371, 536870912
    %v373 = vshrl.u32 %v372, 30
    %v374 = vshll.u32 %v373, 30
    %v375 = vsub.s32 %v371, %v374
    %vm376 = vcmp.lt.s32.totalorder %v375, 0
    %v377 = vsub.s32 0, %v375
    %v378 = vsel %vm376, %v377, %v375
    %v379 = vclz %v378
    %v380 = vsub.s32 %v379, 2
    %vm381 = vcmp.gt.s32.totalorder 0, %v380
    %v382 = vsel %vm381, 0, %v380
    %v383 = vsub.s32 32, %v382
    %v384 = vshll.u32 %v375, %v382
    %v385 = vshrl.u32 %v367, %v383
    %v386 = vor.u32 %v384, %v385
    %v387 = vsub.s32 4294967266, %v382
    %v388 = vadd.s32 %v387, 127
    %v389 = vshll.u32 %v388, 23
    %v390 = vor.u32 4788187, %v389
    %v391 = vand.u32 2147483647, %v390
    %v393 = vcvt.s32.f32 %v386
    %v394 = vmul.f32 %v393, %v391
    %v395 = vxor.u32 %v394, 2147483648
    %v396 = vsel %vm275, %v395, %v394
    %v397 = vsub.s32 4, %v373
    %v398 = vsel %vm275, %v397, %v373
    %v399 = vsel %vm274, %v103, %v396
    %v400 = vsel %vm274, 0, %v398
    %v401 = vmul.f32 %v399, %v399
    %v402 = vmul.f32 %v401, -0.001358992
    %v403 = vadd.f32 %v402, 0.041655596
    %v404 = vmul.f32 %v401, %v403
    %v405 = vadd.f32 %v404, -0.4999988
    %v406 = vmul.f32 %v401, %v405
    %v407 = vadd.f32 1.0, %v406
    %v408 = vmul.f32 %v399, %v399
    %v409 = vmul.f32 %v408, -0.00019511016
    %v410 = vadd.f32 %v409, 0.008332121
    %v411 = vmul.f32 %v408, %v410
    %v412 = vadd.f32 %v411, -0.16666654
    %v413 = vmul.f32 %v408, %v412
    %v414 = vadd.f32 %v413, 1.0
    %v415 = vmul.f32 %v414, %v399
    %vm416 = vweird.f32 %v103
    %v417 = vadd.s32 %v400, 3
    %v418 = vand.u32 %v417, 3
    %vm419 = vcmp.lt.s32.totalorder %v418, 2
    %vm420 = vcmp.eq.s32.totalorder %v418, 0
    %v421 = vxor.u32 %v415, 2147483648
    %v422 = vsel %vm420, %v407, %v421
    %vm423 = vcmp.eq.s32.totalorder %v418, 2
    %v424 = vxor.u32 %v407, 2147483648
    %v425 = vsel %vm423, %v424, %v415
    %v426 = vsel %vm419, %v422, %v425
    %v427 = vsel %vm416, nan, %v426
    %v428 = vand.u32 2147483647, %v104
    %vm429 = vcmp.le.f32.partialorder %v428, 0.7853982
    %vm430 = vcmp.lt.s32.totalorder %v104, 0
    %v431 = vand.u32 %v104, 2139095040
    %v432 = vshrl.u32 %v431, 23
    %v433 = vsub.s32 %v432, 127
    %v434 = vand.u32 2147483647, %v104
    %v435 = vand.u32 %v434, 8388607
    %v436 = vor.u32 %v435, 8388608
    %v437 = vsub.s32 0, %v436
    %v438 = vadd.s32 %v433, 1
    %vm439 = vcmp.gt.s32.totalorder %v438, 0
    %v440 = vsel %vm439, %v438, 0
    %v441 = vshrl.u32 %v440, 5
    %v442 = vand.u32 %v440, 31
    %v443 = vsub.s32 32, %v442
    %v444 = vshrl.u32 683565275, %v443
    %v445 = vshll.u32 683565275, %v442
    %v446 = vshrl.u32 2475754826, %v443
    %v447 = vor.u32 %v445, %v446
    %v448 = vshll.u32 2475754826, %v442
    %v449 = vshrl.u32 2131351028, %v443
    %v450 = vor.u32 %v448, %v449
    %v451 = vshll.u32 2131351028, %v442
    %v452 = vshrl.u32 2102212464, %v443
    %v453 = vor.u32 %v451, %v452
    %v454 = vshll.u32 2102212464, %v442
    %v455 = vshrl.u32 920167782, %v443
    %v456 = vor.u32 %v454, %v455
    %v457 = vshll.u32 920167782, %v442
    %v458 = vshrl.u32 1326507024, %v443
    %v459 = vor.u32 %v457, %v458
    %vm460 = vcmp.lt.s32.totalorder %v441, 1
    %vm461 = vcmp.lt.s32.totalorder %v441, 2
    %vm462 = vcmp.lt.s32.totalorder %v441, 3
    %vm463 = vcmp.lt.s32.totalorder %v441, 4
    %v464 = vsel %vm460, %v444, %v447
    %v465 = vsel %vm463, %v453, 2102212464
    %v466 = vsel %vm462, %v450, %v465
    %v467 = vsel %vm461, %v464, %v466
    %v468 = vsel %vm460, %v447, %v450
    %v469 = vsel %vm463, %v456, 920167782
    %v470 = vsel %vm462, %v453, %v469
    %v471 = vsel %vm461, %v468, %v470
    %v472 = vsel %vm460, %v450, %v453
    %v473 = vsel %vm463, %v459, 1326507024
    %v474 = vsel %vm462, %v456, %v473
    %v475 = vsel %vm461, %v472, %v474
    %v476 = vshll.u32 %v436, 8
    %v477 = vand.u32 %v476, 65535
    %v478 = vshrl.u32 %v476, 16
    %v479 = vand.u32 %v475, 65535
    %v480 = vshrl.u32 %v475, 16
    %v481 = vmul.u32 %v477, %v479
    %v482 = vmul.u32 %v477, %v480
    %v483 = vmul.u32 %v478, %v479
    %v484 = vmul.u32 %v478, %v480
    %v485 = vshll.u32 %v482, 16
    %v486 = vshrl.u32 %v482, 16
    %v487 = vshll.u32 %v483, 16
    %v488 = vshrl.u32 %v483, 16
    %vm489 = vc.u32 %v481, %v485
    %v490 = vsel %vm489, 1, 0
    %v491 = vadd.s32 %v481, %v485
    %v492 = vadd.s32 %v484, %v490
    %vm493 = vc.u32 %v491, %v487
    %v494 = vsel %vm493, 1, 0
    %v495 = vadd.s32 %v491, %v487
    %v496 = vadd.s32 %v492, %v494
    %v497 = vadd.s32 %v496, %v486
    %v498 = vadd.s32 %v497, %v488
    %v499 = vand.u32 %v476, 65535
    %v500 = vshrl.u32 %v476, 16
    %v501 = vand.u32 %v471, 65535
    %v502 = vshrl.u32 %v471, 16
    %v503 = vmul.u32 %v499, %v501
    %v504 = vmul.u32 %v499, %v502
    %v505 = vmul.u32 %v500, %v501
    %v506 = vmul.u32 %v500, %v502
    %v507 = vshll.u32 %v504, 16
    %v508 = vshrl.u32 %v504, 16
    %v509 = vshll.u32 %v505, 16
    %v510 = vshrl.u32 %v505, 16
    %vm511 = vc.u32 %v503, %v507
    %v512 = vsel %vm511, 1, 0
    %v513 = vadd.s32 %v503, %v507
    %v514 = vadd.s32 %v506, %v512
    %vm515 = vc.u32 %v513, %v509
    %v516 = vsel %vm515, 1, 0
    %v517 = vadd.s32 %v513, %v509
    %v518 = vadd.s32 %v514, %v516
    %v519 = vadd.s32 %v518, %v508
    %v520 = vadd.s32 %v519, %v510
    %v521 = vmul.u32 %v476, %v467
    %v522 = vadd.s32 %v498, %v517
    %vm523 = vc.u32 %v498, %v517
    %v524 = vadd.s32 %v520, 1
    %v525 = vsel %vm523, %v524, %v520
    %v526 = vadd.s32 %v521, %v525
    %v527 = vadd.s32 %v526, 536870912
    %v528 = vshrl.u32 %v527, 30
    %v529 = vshll.u32 %v528, 30
    %v530 = vsub.s32 %v526, %v529
    %vm531 = vcmp.lt.s32.totalorder %v530, 0
    %v532 = vsub.s32 0, %v530
    %v533 = vsel %vm531, %v532, %v530
    %v534 = vclz %v533
    %v535 = vsub.s32 %v534, 2
    %vm536 = vcmp.gt.s32.totalorder 0, %v535
    %v537 = vsel %vm536, 0, %v535
    %v538 = vsub.s32 32, %v537
    %v539 = vshll.u32 %v530, %v537
    %v540 = vshrl.u32 %v522, %v538
    %v541 = vor.u32 %v539, %v540
    %v542 = vsub.s32 4294967266, %v537
    %v543 = vadd.s32 %v542, 127
    %v544 = vshll.u32 %v543, 23
    %v545 = vor.u32 4788187, %v544
    %v546 = vand.u32 2147483647, %v545
    %v548 = vcvt.s32.f32 %v541
    %v549 = vmul.f32 %v548, %v546
    %v550 = vxor.u32 %v549, 2147483648
    %v551 = vsel %vm430, %v550, %v549
    %v552 = vsub.s32 4, %v528
    %v553 = vsel %vm430, %v552, %v528
    %v554 = vsel %vm429, %v104, %v551
    %v555 = vsel %vm429, 0, %v553
    %v556 = vmul.f32 %v554, %v554
    %v557 = vmul.f32 %v556, -0.001358992
    %v558 = vadd.f32 %v557, 0.041655596
    %v559 = vmul.f32 %v556, %v558
    %v560 = vadd.f32 %v559, -0.4999988
    %v561 = vmul.f32 %v556, %v560
    %v562 = vadd.f32 1.0, %v561
    %v563 = vmul.f32 %v554, %v554
    %v564 = vmul.f32 %v563, -0.00019511016
    %v565 = vadd.f32 %v564, 0.008332121
    %v566 = vmul.f32 %v563, %v565
    %v567 = vadd.f32 %v566, -0.16666654
    %v568 = vmul.f32 %v563, %v567
    %v569 = vadd.f32 %v568, 1.0
    %v570 = vmul.f32 %v569, %v554
    %vm571 = vweird.f32 %v104
    %v572 = vadd.s32 %v555, 3
    %v573 = vand.u32 %v572, 3
    %vm574 = vcmp.lt.s32.totalorder %v573, 2
    %vm575 = vcmp.eq.s32.totalorder %v573, 0
    %v576 = vxor.u32 %v570, 2147483648
    %v577 = vsel %vm575, %v562, %v576
    %vm578 = vcmp.eq.s32.totalorder %v573, 2
    %v579 = vxor.u32 %v562, 2147483648
    %v580 = vsel %vm578, %v579, %v570
    %v581 = vsel %vm574, %v577, %v580
    %v582 = vsel %vm571, nan, %v581
    %v583 = vand.u32 2147483647, %v105
    %vm584 = vcmp.le.f32.partialorder %v583, 0.7853982
    %vm585 = vcmp.lt.s32.totalorder %v105, 0
    %v586 = vand.u32 %v105, 2139095040
    %v587 = vshrl.u32 %v586, 23
    %v588 = vsub.s32 %v587, 127
    %v589 = vand.u32 2147483647, %v105
    %v590 = vand.u32 %v589, 8388607
    %v591 = vor.u32 %v590, 8388608
    %v592 = vsub.s32 0, %v591
    %v593 = vadd.s32 %v588, 1
    %vm594 = vcmp.gt.s32.totalorder %v593, 0
    %v595 = vsel %vm594, %v593, 0
    %v596 = vshrl.u32 %v595, 5
    %v597 = vand.u32 %v595, 31
    %v598 = vsub.s32 32, %v597
    %v599 = vshrl.u32 683565275, %v598
    %v600 = vshll.u32 683565275, %v597
    %v601 = vshrl.u32 2475754826, %v598
    %v602 = vor.u32 %v600, %v601
    %v603 = vshll.u32 2475754826, %v597
    %v604 = vshrl.u32 2131351028, %v598
    %v605 = vor.u32 %v603, %v604
    %v606 = vshll.u32 2131351028, %v597
    %v607 = vshrl.u32 2102212464, %v598
    %v608 = vor.u32 %v606, %v607
    %v609 = vshll.u32 2102212464, %v597
    %v610 = vshrl.u32 920167782, %v598
    %v611 = vor.u32 %v609, %v610
    %v612 = vshll.u32 920167782, %v597
    %v613 = vshrl.u32 1326507024, %v598
    %v614 = vor.u32 %v612, %v613
    %vm615 = vcmp.lt.s32.totalorder %v596, 1
    %vm616 = vcmp.lt.s32.totalorder %v596, 2
    %vm617 = vcmp.lt.s32.totalorder %v596, 3
    %vm618 = vcmp.lt.s32.totalorder %v596, 4
    %v619 = vsel %vm615, %v599, %v602
    %v620 = vsel %vm618, %v608, 2102212464
    %v621 = vsel %vm617, %v605, %v620
    %v622 = vsel %vm616, %v619, %v621
    %v623 = vsel %vm615, %v602, %v605
    %v624 = vsel %vm618, %v611, 920167782
    %v625 = vsel %vm617, %v608, %v624
    %v626 = vsel %vm616, %v623, %v625
    %v627 = vsel %vm615, %v605, %v608
    %v628 = vsel %vm618, %v614, 1326507024
    %v629 = vsel %vm617, %v611, %v628
    %v630 = vsel %vm616, %v627, %v629
    %v631 = vshll.u32 %v591, 8
    %v632 = vand.u32 %v631, 65535
    %v633 = vshrl.u32 %v631, 16
    %v634 = vand.u32 %v630, 65535
    %v635 = vshrl.u32 %v630, 16
    %v636 = vmul.u32 %v632, %v634
    %v637 = vmul.u32 %v632, %v635
    %v638 = vmul.u32 %v633, %v634
    %v639 = vmul.u32 %v633, %v635
    %v640 = vshll.u32 %v637, 16
    %v641 = vshrl.u32 %v637, 16
    %v642 = vshll.u32 %v638, 16
    %v643 = vshrl.u32 %v638, 16
    %vm644 = vc.u32 %v636, %v640
    %v645 = vsel %vm644, 1, 0
    %v646 = vadd.s32 %v636, %v640
    %v647 = vadd.s32 %v639, %v645
    %vm648 = vc.u32 %v646, %v642
    %v649 = vsel %vm648, 1, 0
    %v650 = vadd.s32 %v646, %v642
    %v651 = vadd.s32 %v647, %v649
    %v652 = vadd.s32 %v651, %v641
    %v653 = vadd.s32 %v652, %v643
    %v654 = vand.u32 %v631, 65535
    %v655 = vshrl.u32 %v631, 16
    %v656 = vand.u32 %v626, 65535
    %v657 = vshrl.u32 %v626, 16
    %v658 = vmul.u32 %v654, %v656
    %v659 = vmul.u32 %v654, %v657
    %v660 = vmul.u32 %v655, %v656
    %v661 = vmul.u32 %v655, %v657
    %v662 = vshll.u32 %v659, 16
    %v663 = vshrl.u32 %v659, 16
    %v664 = vshll.u32 %v660, 16
    %v665 = vshrl.u32 %v660, 16
    %vm666 = vc.u32 %v658, %v662
    %v667 = vsel %vm666, 1, 0
    %v668 = vadd.s32 %v658, %v662
    %v669 = vadd.s32 %v661, %v667
    %vm670 = vc.u32 %v668, %v664
    %v671 = vsel %vm670, 1, 0
    %v672 = vadd.s32 %v668, %v664
    %v673 = vadd.s32 %v669, %v671
    %v674 = vadd.s32 %v673, %v663
    %v675 = vadd.s32 %v674, %v665
    %v676 = vmul.u32 %v631, %v622
    %v677 = vadd.s32 %v653, %v672
    %vm678 = vc.u32 %v653, %v672
    %v679 = vadd.s32 %v675, 1
    %v680 = vsel %vm678, %v679, %v675
    %v681 = vadd.s32 %v676, %v680
    %v682 = vadd.s32 %v681, 536870912
    %v683 = vshrl.u32 %v682, 30
    %v684 = vshll.u32 %v683, 30
    %v685 = vsub.s32 %v681, %v684
    %vm686 = vcmp.lt.s32.totalorder %v685, 0
    %v687 = vsub.s32 0, %v685
    %v688 = vsel %vm686, %v687, %v685
    %v689 = vclz %v688
    %v690 = vsub.s32 %v689, 2
    %vm691 = vcmp.gt.s32.totalorder 0, %v690
    %v692 = vsel %vm691, 0, %v690
    %v693 = vsub.s32 32, %v692
    %v694 = vshll.u32 %v685, %v692
    %v695 = vshrl.u32 %v677, %v693
    %v696 = vor.u32 %v694, %v695
    %v697 = vsub.s32 4294967266, %v692
    %v698 = vadd.s32 %v697, 127
    %v699 = vshll.u32 %v698, 23
    %v700 = vor.u32 4788187, %v699
    %v701 = vand.u32 2147483647, %v700
    %v703 = vcvt.s32.f32 %v696
    %v704 = vmul.f32 %v703, %v701
    %v705 = vxor.u32 %v704, 2147483648
    %v706 = vsel %vm585, %v705, %v704
    %v707 = vsub.s32 4, %v683
    %v708 = vsel %vm585, %v707, %v683
    %v709 = vsel %vm584, %v105, %v706
    %v710 = vsel %vm584, 0, %v708
    %v711 = vmul.f32 %v709, %v709
    %v712 = vmul.f32 %v711, -0.001358992
    %v713 = vadd.f32 %v712, 0.041655596
    %v714 = vmul.f32 %v711, %v713
    %v715 = vadd.f32 %v714, -0.4999988
    %v716 = vmul.f32 %v711, %v715
    %v717 = vadd.f32 1.0, %v716
    %v718 = vmul.f32 %v709, %v709
    %v719 = vmul.f32 %v718, -0.00019511016
    %v720 = vadd.f32 %v719, 0.008332121
    %v721 = vmul.f32 %v718, %v720
    %v722 = vadd.f32 %v721, -0.16666654
    %v723 = vmul.f32 %v718, %v722
    %v724 = vadd.f32 %v723, 1.0
    %v725 = vmul.f32 %v724, %v709
    %vm726 = vweird.f32 %v105
    %v727 = vadd.s32 %v710, 3
    %v728 = vand.u32 %v727, 3
    %vm729 = vcmp.lt.s32.totalorder %v728, 2
    %vm730 = vcmp.eq.s32.totalorder %v728, 0
    %v731 = vxor.u32 %v725, 2147483648
    %v732 = vsel %vm730, %v717, %v731
    %vm733 = vcmp.eq.s32.totalorder %v728, 2
    %v734 = vxor.u32 %v717, 2147483648
    %v735 = vsel %vm733, %v734, %v725
    %v736 = vsel %vm729, %v732, %v735
    %v737 = vsel %vm726, nan, %v736
    %v738 = vand.u32 2147483647, %v106
    %vm739 = vcmp.le.f32.partialorder %v738, 0.7853982
    %vm740 = vcmp.lt.s32.totalorder %v106, 0
    %v741 = vand.u32 %v106, 2139095040
    %v742 = vshrl.u32 %v741, 23
    %v743 = vsub.s32 %v742, 127
    %v744 = vand.u32 2147483647, %v106
    %v745 = vand.u32 %v744, 8388607
    %v746 = vor.u32 %v745, 8388608
    %v747 = vsub.s32 0, %v746
    %v748 = vadd.s32 %v743, 1
    %vm749 = vcmp.gt.s32.totalorder %v748, 0
    %v750 = vsel %vm749, %v748, 0
    %v751 = vshrl.u32 %v750, 5
    %v752 = vand.u32 %v750, 31
    %v753 = vsub.s32 32, %v752
    %v754 = vshrl.u32 683565275, %v753
    %v755 = vshll.u32 683565275, %v752
    %v756 = vshrl.u32 2475754826, %v753
    %v757 = vor.u32 %v755, %v756
    %v758 = vshll.u32 2475754826, %v752
    %v759 = vshrl.u32 2131351028, %v753
    %v760 = vor.u32 %v758, %v759
    %v761 = vshll.u32 2131351028, %v752
    %v762 = vshrl.u32 2102212464, %v753
    %v763 = vor.u32 %v761, %v762
    %v764 = vshll.u32 2102212464, %v752
    %v765 = vshrl.u32 920167782, %v753
    %v766 = vor.u32 %v764, %v765
    %v767 = vshll.u32 920167782, %v752
    %v768 = vshrl.u32 1326507024, %v753
    %v769 = vor.u32 %v767, %v768
    %vm770 = vcmp.lt.s32.totalorder %v751, 1
    %vm771 = vcmp.lt.s32.totalorder %v751, 2
    %vm772 = vcmp.lt.s32.totalorder %v751, 3
    %vm773 = vcmp.lt.s32.totalorder %v751, 4
    %v774 = vsel %vm770, %v754, %v757
    %v775 = vsel %vm773, %v763, 2102212464
    %v776 = vsel %vm772, %v760, %v775
    %v777 = vsel %vm771, %v774, %v776
    %v778 = vsel %vm770, %v757, %v760
    %v779 = vsel %vm773, %v766, 920167782
    %v780 = vsel %vm772, %v763, %v779
    %v781 = vsel %vm771, %v778, %v780
    %v782 = vsel %vm770, %v760, %v763
    %v783 = vsel %vm773, %v769, 1326507024
    %v784 = vsel %vm772, %v766, %v783
    %v785 = vsel %vm771, %v782, %v784
    %v786 = vshll.u32 %v746, 8
    %v787 = vand.u32 %v786, 65535
    %v788 = vshrl.u32 %v786, 16
    %v789 = vand.u32 %v785, 65535
    %v790 = vshrl.u32 %v785, 16
    %v791 = vmul.u32 %v787, %v789
    %v792 = vmul.u32 %v787, %v790
    %v793 = vmul.u32 %v788, %v789
    %v794 = vmul.u32 %v788, %v790
    %v795 = vshll.u32 %v792, 16
    %v796 = vshrl.u32 %v792, 16
    %v797 = vshll.u32 %v793, 16
    %v798 = vshrl.u32 %v793, 16
    %vm799 = vc.u32 %v791, %v795
    %v800 = vsel %vm799, 1, 0
    %v801 = vadd.s32 %v791, %v795
    %v802 = vadd.s32 %v794, %v800
    %vm803 = vc.u32 %v801, %v797
    %v804 = vsel %vm803, 1, 0
    %v805 = vadd.s32 %v801, %v797
    %v806 = vadd.s32 %v802, %v804
    %v807 = vadd.s32 %v806, %v796
    %v808 = vadd.s32 %v807, %v798
    %v809 = vand.u32 %v786, 65535
    %v810 = vshrl.u32 %v786, 16
    %v811 = vand.u32 %v781, 65535
    %v812 = vshrl.u32 %v781, 16
    %v813 = vmul.u32 %v809, %v811
    %v814 = vmul.u32 %v809, %v812
    %v815 = vmul.u32 %v810, %v811
    %v816 = vmul.u32 %v810, %v812
    %v817 = vshll.u32 %v814, 16
    %v818 = vshrl.u32 %v814, 16
    %v819 = vshll.u32 %v815, 16
    %v820 = vshrl.u32 %v815, 16
    %vm821 = vc.u32 %v813, %v817
    %v822 = vsel %vm821, 1, 0
    %v823 = vadd.s32 %v813, %v817
    %v824 = vadd.s32 %v816, %v822
    %vm825 = vc.u32 %v823, %v819
    %v826 = vsel %vm825, 1, 0
    %v827 = vadd.s32 %v823, %v819
    %v828 = vadd.s32 %v824, %v826
    %v829 = vadd.s32 %v828, %v818
    %v830 = vadd.s32 %v829, %v820
    %v831 = vmul.u32 %v786, %v777
    %v832 = vadd.s32 %v808, %v827
    %vm833 = vc.u32 %v808, %v827
    %v834 = vadd.s32 %v830, 1
    %v835 = vsel %vm833, %v834, %v830
    %v836 = vadd.s32 %v831, %v835
    %v837 = vadd.s32 %v836, 536870912
    %v838 = vshrl.u32 %v837, 30
    %v839 = vshll.u32 %v838, 30
    %v840 = vsub.s32 %v836, %v839
    %vm841 = vcmp.lt.s32.totalorder %v840, 0
    %v842 = vsub.s32 0, %v840
    %v843 = vsel %vm841, %v842, %v840
    %v844 = vclz %v843
    %v845 = vsub.s32 %v844, 2
    %vm846 = vcmp.gt.s32.totalorder 0, %v845
    %v847 = vsel %vm846, 0, %v845
    %v848 = vsub.s32 32, %v847
    %v849 = vshll.u32 %v840, %v847
    %v850 = vshrl.u32 %v832, %v848
    %v851 = vor.u32 %v849, %v850
    %v852 = vsub.s32 4294967266, %v847
    %v853 = vadd.s32 %v852, 127
    %v854 = vshll.u32 %v853, 23
    %v855 = vor.u32 4788187, %v854
    %v856 = vand.u32 2147483647, %v855
    %v858 = vcvt.s32.f32 %v851
    %v859 = vmul.f32 %v858, %v856
    %v860 = vxor.u32 %v859, 2147483648
    %v861 = vsel %vm740, %v860, %v859
    %v862 = vsub.s32 4, %v838
    %v863 = vsel %vm740, %v862, %v838
    %v864 = vsel %vm739, %v106, %v861
    %v865 = vsel %vm739, 0, %v863
    %v866 = vmul.f32 %v864, %v864
    %v867 = vmul.f32 %v866, -0.001358992
    %v868 = vadd.f32 %v867, 0.041655596
    %v869 = vmul.f32 %v866, %v868
    %v870 = vadd.f32 %v869, -0.4999988
    %v871 = vmul.f32 %v866, %v870
    %v872 = vadd.f32 1.0, %v871
    %v873 = vmul.f32 %v864, %v864
    %v874 = vmul.f32 %v873, -0.00019511016
    %v875 = vadd.f32 %v874, 0.008332121
    %v876 = vmul.f32 %v873, %v875
    %v877 = vadd.f32 %v876, -0.16666654
    %v878 = vmul.f32 %v873, %v877
    %v879 = vadd.f32 %v878, 1.0
    %v880 = vmul.f32 %v879, %v864
    %vm881 = vweird.f32 %v106
    %v882 = vadd.s32 %v865, 3
    %v883 = vand.u32 %v882, 3
    %vm884 = vcmp.lt.s32.totalorder %v883, 2
    %vm885 = vcmp.eq.s32.totalorder %v883, 0
    %v886 = vxor.u32 %v880, 2147483648
    %v887 = vsel %vm885, %v872, %v886
    %vm888 = vcmp.eq.s32.totalorder %v883, 2
    %v889 = vxor.u32 %v872, 2147483648
    %v890 = vsel %vm888, %v889, %v880
    %v891 = vsel %vm884, %v887, %v890
    %v892 = vsel %vm881, nan, %v891
    %v893 = vand.u32 2147483647, %v107
    %vm894 = vcmp.le.f32.partialorder %v893, 0.7853982
    %vm895 = vcmp.lt.s32.totalorder %v107, 0
    %v896 = vand.u32 %v107, 2139095040
    %v897 = vshrl.u32 %v896, 23
    %v898 = vsub.s32 %v897, 127
    %v899 = vand.u32 2147483647, %v107
    %v900 = vand.u32 %v899, 8388607
    %v901 = vor.u32 %v900, 8388608
    %v902 = vsub.s32 0, %v901
    %v903 = vadd.s32 %v898, 1
    %vm904 = vcmp.gt.s32.totalorder %v903, 0
    %v905 = vsel %vm904, %v903, 0
    %v906 = vshrl.u32 %v905, 5
    %v907 = vand.u32 %v905, 31
    %v908 = vsub.s32 32, %v907
    %v909 = vshrl.u32 683565275, %v908
    %v910 = vshll.u32 683565275, %v907
    %v911 = vshrl.u32 2475754826, %v908
    %v912 = vor.u32 %v910, %v911
    %v913 = vshll.u32 2475754826, %v907
    %v914 = vshrl.u32 2131351028, %v908
    %v915 = vor.u32 %v913, %v914
    %v916 = vshll.u32 2131351028, %v907
    %v917 = vshrl.u32 2102212464, %v908
    %v918 = vor.u32 %v916, %v917
    %v919 = vshll.u32 2102212464, %v907
    %v920 = vshrl.u32 920167782, %v908
    %v921 = vor.u32 %v919, %v920
    %v922 = vshll.u32 920167782, %v907
    %v923 = vshrl.u32 1326507024, %v908
    %v924 = vor.u32 %v922, %v923
    %vm925 = vcmp.lt.s32.totalorder %v906, 1
    %vm926 = vcmp.lt.s32.totalorder %v906, 2
    %vm927 = vcmp.lt.s32.totalorder %v906, 3
    %vm928 = vcmp.lt.s32.totalorder %v906, 4
    %v929 = vsel %vm925, %v909, %v912
    %v930 = vsel %vm928, %v918, 2102212464
    %v931 = vsel %vm927, %v915, %v930
    %v932 = vsel %vm926, %v929, %v931
    %v933 = vsel %vm925, %v912, %v915
    %v934 = vsel %vm928, %v921, 920167782
    %v935 = vsel %vm927, %v918, %v934
    %v936 = vsel %vm926, %v933, %v935
    %v937 = vsel %vm925, %v915, %v918
    %v938 = vsel %vm928, %v924, 1326507024
    %v939 = vsel %vm927, %v921, %v938
    %v940 = vsel %vm926, %v937, %v939
    %v941 = vshll.u32 %v901, 8
    %v942 = vand.u32 %v941, 65535
    %v943 = vshrl.u32 %v941, 16
    %v944 = vand.u32 %v940, 65535
    %v945 = vshrl.u32 %v940, 16
    %v946 = vmul.u32 %v942, %v944
    %v947 = vmul.u32 %v942, %v945
    %v948 = vmul.u32 %v943, %v944
    %v949 = vmul.u32 %v943, %v945
    %v950 = vshll.u32 %v947, 16
    %v951 = vshrl.u32 %v947, 16
    %v952 = vshll.u32 %v948, 16
    %v953 = vshrl.u32 %v948, 16
    %vm954 = vc.u32 %v946, %v950
    %v955 = vsel %vm954, 1, 0
    %v956 = vadd.s32 %v946, %v950
    %v957 = vadd.s32 %v949, %v955
    %vm958 = vc.u32 %v956, %v952
    %v959 = vsel %vm958, 1, 0
    %v960 = vadd.s32 %v956, %v952
    %v961 = vadd.s32 %v957, %v959
    %v962 = vadd.s32 %v961, %v951
    %v963 = vadd.s32 %v962, %v953
    %v964 = vand.u32 %v941, 65535
    %v965 = vshrl.u32 %v941, 16
    %v966 = vand.u32 %v936, 65535
    %v967 = vshrl.u32 %v936, 16
    %v968 = vmul.u32 %v964, %v966
    %v969 = vmul.u32 %v964, %v967
    %v970 = vmul.u32 %v965, %v966
    %v971 = vmul.u32 %v965, %v967
    %v972 = vshll.u32 %v969, 16
    %v973 = vshrl.u32 %v969, 16
    %v974 = vshll.u32 %v970, 16
    %v975 = vshrl.u32 %v970, 16
    %vm976 = vc.u32 %v968, %v972
    %v977 = vsel %vm976, 1, 0
    %v978 = vadd.s32 %v968, %v972
    %v979 = vadd.s32 %v971, %v977
    %vm980 = vc.u32 %v978, %v974
    %v981 = vsel %vm980, 1, 0
    %v982 = vadd.s32 %v978, %v974
    %v983 = vadd.s32 %v979, %v981
    %v984 = vadd.s32 %v983, %v973
    %v985 = vadd.s32 %v984, %v975
    %v986 = vmul.u32 %v941, %v932
    %v987 = vadd.s32 %v963, %v982
    %vm988 = vc.u32 %v963, %v982
    %v989 = vadd.s32 %v985, 1
    %v990 = vsel %vm988, %v989, %v985
    %v991 = vadd.s32 %v986, %v990
    %v992 = vadd.s32 %v991, 536870912
    %v993 = vshrl.u32 %v992, 30
    %v994 = vshll.u32 %v993, 30
    %v995 = vsub.s32 %v991, %v994
    %vm996 = vcmp.lt.s32.totalorder %v995, 0
    %v997 = vsub.s32 0, %v995
    %v998 = vsel %vm996, %v997, %v995
    %v999 = vclz %v998
    %v1000 = vsub.s32 %v999, 2
    %vm1001 = vcmp.gt.s32.totalorder 0, %v1000
    %v1002 = vsel %vm1001, 0, %v1000
    %v1003 = vsub.s32 32, %v1002
    %v1004 = vshll.u32 %v995, %v1002
    %v1005 = vshrl.u32 %v987, %v1003
    %v1006 = vor.u32 %v1004, %v1005
    %v1007 = vsub.s32 4294967266, %v1002
    %v1008 = vadd.s32 %v1007, 127
    %v1009 = vshll.u32 %v1008, 23
    %v1010 = vor.u32 4788187, %v1009
    %v1011 = vand.u32 2147483647, %v1010
    %v1013 = vcvt.s32.f32 %v1006
    %v1014 = vmul.f32 %v1013, %v1011
    %v1015 = vxor.u32 %v1014, 2147483648
    %v1016 = vsel %vm895, %v1015, %v1014
    %v1017 = vsub.s32 4, %v993
    %v1018 = vsel %vm895, %v1017, %v993
    %v1019 = vsel %vm894, %v107, %v1016
    %v1020 = vsel %vm894, 0, %v1018
    %v1021 = vmul.f32 %v1019, %v1019
    %v1022 = vmul.f32 %v1021, -0.001358992
    %v1023 = vadd.f32 %v1022, 0.041655596
    %v1024 = vmul.f32 %v1021, %v1023
    %v1025 = vadd.f32 %v1024, -0.4999988
    %v1026 = vmul.f32 %v1021, %v1025
    %v1027 = vadd.f32 1.0, %v1026
    %v1028 = vmul.f32 %v1019, %v1019
    %v1029 = vmul.f32 %v1028, -0.00019511016
    %v1030 = vadd.f32 %v1029, 0.008332121
    %v1031 = vmul.f32 %v1028, %v1030
    %v1032 = vadd.f32 %v1031, -0.16666654
    %v1033 = vmul.f32 %v1028, %v1032
    %v1034 = vadd.f32 %v1033, 1.0
    %v1035 = vmul.f32 %v1034, %v1019
    %vm1036 = vweird.f32 %v107
    %v1037 = vadd.s32 %v1020, 3
    %v1038 = vand.u32 %v1037, 3
    %vm1039 = vcmp.lt.s32.totalorder %v1038, 2
    %vm1040 = vcmp.eq.s32.totalorder %v1038, 0
    %v1041 = vxor.u32 %v1035, 2147483648
    %v1042 = vsel %vm1040, %v1027, %v1041
    %vm1043 = vcmp.eq.s32.totalorder %v1038, 2
    %v1044 = vxor.u32 %v1027, 2147483648
    %v1045 = vsel %vm1043, %v1044, %v1035
    %v1046 = vsel %vm1039, %v1042, %v1045
    %v1047 = vsel %vm1036, nan, %v1046
    %v1048 = vand.u32 2147483647, %v108
    %vm1049 = vcmp.le.f32.partialorder %v1048, 0.7853982
    %vm1050 = vcmp.lt.s32.totalorder %v108, 0
    %v1051 = vand.u32 %v108, 2139095040
    %v1052 = vshrl.u32 %v1051, 23
    %v1053 = vsub.s32 %v1052, 127
    %v1054 = vand.u32 2147483647, %v108
    %v1055 = vand.u32 %v1054, 8388607
    %v1056 = vor.u32 %v1055, 8388608
    %v1057 = vsub.s32 0, %v1056
    %v1058 = vadd.s32 %v1053, 1
    %vm1059 = vcmp.gt.s32.totalorder %v1058, 0
    %v1060 = vsel %vm1059, %v1058, 0
    %v1061 = vshrl.u32 %v1060, 5
    %v1062 = vand.u32 %v1060, 31
    %v1063 = vsub.s32 32, %v1062
    %v1064 = vshrl.u32 683565275, %v1063
    %v1065 = vshll.u32 683565275, %v1062
    %v1066 = vshrl.u32 2475754826, %v1063
    %v1067 = vor.u32 %v1065, %v1066
    %v1068 = vshll.u32 2475754826, %v1062
    %v1069 = vshrl.u32 2131351028, %v1063
    %v1070 = vor.u32 %v1068, %v1069
    %v1071 = vshll.u32 2131351028, %v1062
    %v1072 = vshrl.u32 2102212464, %v1063
    %v1073 = vor.u32 %v1071, %v1072
    %v1074 = vshll.u32 2102212464, %v1062
    %v1075 = vshrl.u32 920167782, %v1063
    %v1076 = vor.u32 %v1074, %v1075
    %v1077 = vshll.u32 920167782, %v1062
    %v1078 = vshrl.u32 1326507024, %v1063
    %v1079 = vor.u32 %v1077, %v1078
    %vm1080 = vcmp.lt.s32.totalorder %v1061, 1
    %vm1081 = vcmp.lt.s32.totalorder %v1061, 2
    %vm1082 = vcmp.lt.s32.totalorder %v1061, 3
    %vm1083 = vcmp.lt.s32.totalorder %v1061, 4
    %v1084 = vsel %vm1080, %v1064, %v1067
    %v1085 = vsel %vm1083, %v1073, 2102212464
    %v1086 = vsel %vm1082, %v1070, %v1085
    %v1087 = vsel %vm1081, %v1084, %v1086
    %v1088 = vsel %vm1080, %v1067, %v1070
    %v1089 = vsel %vm1083, %v1076, 920167782
    %v1090 = vsel %vm1082, %v1073, %v1089
    %v1091 = vsel %vm1081, %v1088, %v1090
    %v1092 = vsel %vm1080, %v1070, %v1073
    %v1093 = vsel %vm1083, %v1079, 1326507024
    %v1094 = vsel %vm1082, %v1076, %v1093
    %v1095 = vsel %vm1081, %v1092, %v1094
    %v1096 = vshll.u32 %v1056, 8
    %v1097 = vand.u32 %v1096, 65535
    %v1098 = vshrl.u32 %v1096, 16
    %v1099 = vand.u32 %v1095, 65535
    %v1100 = vshrl.u32 %v1095, 16
    %v1101 = vmul.u32 %v1097, %v1099
    %v1102 = vmul.u32 %v1097, %v1100
    %v1103 = vmul.u32 %v1098, %v1099
    %v1104 = vmul.u32 %v1098, %v1100
    %v1105 = vshll.u32 %v1102, 16
    %v1106 = vshrl.u32 %v1102, 16
    %v1107 = vshll.u32 %v1103, 16
    %v1108 = vshrl.u32 %v1103, 16
    %vm1109 = vc.u32 %v1101, %v1105
    %v1110 = vsel %vm1109, 1, 0
    %v1111 = vadd.s32 %v1101, %v1105
    %v1112 = vadd.s32 %v1104, %v1110
    %vm1113 = vc.u32 %v1111, %v1107
    %v1114 = vsel %vm1113, 1, 0
    %v1115 = vadd.s32 %v1111, %v1107
    %v1116 = vadd.s32 %v1112, %v1114
    %v1117 = vadd.s32 %v1116, %v1106
    %v1118 = vadd.s32 %v1117, %v1108
    %v1119 = vand.u32 %v1096, 65535
    %v1120 = vshrl.u32 %v1096, 16
    %v1121 = vand.u32 %v1091, 65535
    %v1122 = vshrl.u32 %v1091, 16
    %v1123 = vmul.u32 %v1119, %v1121
    %v1124 = vmul.u32 %v1119, %v1122
    %v1125 = vmul.u32 %v1120, %v1121
    %v1126 = vmul.u32 %v1120, %v1122
    %v1127 = vshll.u32 %v1124, 16
    %v1128 = vshrl.u32 %v1124, 16
    %v1129 = vshll.u32 %v1125, 16
    %v1130 = vshrl.u32 %v1125, 16
    %vm1131 = vc.u32 %v1123, %v1127
    %v1132 = vsel %vm1131, 1, 0
    %v1133 = vadd.s32 %v1123, %v1127
    %v1134 = vadd.s32 %v1126, %v1132
    %vm1135 = vc.u32 %v1133, %v1129
    %v1136 = vsel %vm1135, 1, 0
    %v1137 = vadd.s32 %v1133, %v1129
    %v1138 = vadd.s32 %v1134, %v1136
    %v1139 = vadd.s32 %v1138, %v1128
    %v1140 = vadd.s32 %v1139, %v1130
    %v1141 = vmul.u32 %v1096, %v1087
    %v1142 = vadd.s32 %v1118, %v1137
    %vm1143 = vc.u32 %v1118, %v1137
    %v1144 = vadd.s32 %v1140, 1
    %v1145 = vsel %vm1143, %v1144, %v1140
    %v1146 = vadd.s32 %v1141, %v1145
    %v1147 = vadd.s32 %v1146, 536870912
    %v1148 = vshrl.u32 %v1147, 30
    %v1149 = vshll.u32 %v1148, 30
    %v1150 = vsub.s32 %v1146, %v1149
    %vm1151 = vcmp.lt.s32.totalorder %v1150, 0
    %v1152 = vsub.s32 0, %v1150
    %v1153 = vsel %vm1151, %v1152, %v1150
    %v1154 = vclz %v1153
    %v1155 = vsub.s32 %v1154, 2
    %vm1156 = vcmp.gt.s32.totalorder 0, %v1155
    %v1157 = vsel %vm1156, 0, %v1155
    %v1158 = vsub.s32 32, %v1157
    %v1159 = vshll.u32 %v1150, %v1157
    %v1160 = vshrl.u32 %v1142, %v1158
    %v1161 = vor.u32 %v1159, %v1160
    %v1162 = vsub.s32 4294967266, %v1157
    %v1163 = vadd.s32 %v1162, 127
    %v1164 = vshll.u32 %v1163, 23
    %v1165 = vor.u32 4788187, %v1164
    %v1166 = vand.u32 2147483647, %v1165
    %v1168 = vcvt.s32.f32 %v1161
    %v1169 = vmul.f32 %v1168, %v1166
    %v1170 = vxor.u32 %v1169, 2147483648
    %v1171 = vsel %vm1050, %v1170, %v1169
    %v1172 = vsub.s32 4, %v1148
    %v1173 = vsel %vm1050, %v1172, %v1148
    %v1174 = vsel %vm1049, %v108, %v1171
    %v1175 = vsel %vm1049, 0, %v1173
    %v1176 = vmul.f32 %v1174, %v1174
    %v1177 = vmul.f32 %v1176, -0.001358992
    %v1178 = vadd.f32 %v1177, 0.041655596
    %v1179 = vmul.f32 %v1176, %v1178
    %v1180 = vadd.f32 %v1179, -0.4999988
    %v1181 = vmul.f32 %v1176, %v1180
    %v1182 = vadd.f32 1.0, %v1181
    %v1183 = vmul.f32 %v1174, %v1174
    %v1184 = vmul.f32 %v1183, -0.00019511016
    %v1185 = vadd.f32 %v1184, 0.008332121
    %v1186 = vmul.f32 %v1183, %v1185
    %v1187 = vadd.f32 %v1186, -0.16666654
    %v1188 = vmul.f32 %v1183, %v1187
    %v1189 = vadd.f32 %v1188, 1.0
    %v1190 = vmul.f32 %v1189, %v1174
    %vm1191 = vweird.f32 %v108
    %v1192 = vadd.s32 %v1175, 3
    %v1193 = vand.u32 %v1192, 3
    %vm1194 = vcmp.lt.s32.totalorder %v1193, 2
    %vm1195 = vcmp.eq.s32.totalorder %v1193, 0
    %v1196 = vxor.u32 %v1190, 2147483648
    %v1197 = vsel %vm1195, %v1182, %v1196
    %vm1198 = vcmp.eq.s32.totalorder %v1193, 2
    %v1199 = vxor.u32 %v1182, 2147483648
    %v1200 = vsel %vm1198, %v1199, %v1190
    %v1201 = vsel %vm1194, %v1197, %v1200
    %v1202 = vsel %vm1191, nan, %v1201
    %v1203 = vand.u32 2147483647, %v109
    %vm1204 = vcmp.le.f32.partialorder %v1203, 0.7853982
    %vm1205 = vcmp.lt.s32.totalorder %v109, 0
    %v1206 = vand.u32 %v109, 2139095040
    %v1207 = vshrl.u32 %v1206, 23
    %v1208 = vsub.s32 %v1207, 127
    %v1209 = vand.u32 2147483647, %v109
    %v1210 = vand.u32 %v1209, 8388607
    %v1211 = vor.u32 %v1210, 8388608
    %v1212 = vsub.s32 0, %v1211
    %v1213 = vadd.s32 %v1208, 1
    %vm1214 = vcmp.gt.s32.totalorder %v1213, 0
    %v1215 = vsel %vm1214, %v1213, 0
    %v1216 = vshrl.u32 %v1215, 5
    %v1217 = vand.u32 %v1215, 31
    %v1218 = vsub.s32 32, %v1217
    %v1219 = vshrl.u32 683565275, %v1218
    %v1220 = vshll.u32 683565275, %v1217
    %v1221 = vshrl.u32 2475754826, %v1218
    %v1222 = vor.u32 %v1220, %v1221
    %v1223 = vshll.u32 2475754826, %v1217
    %v1224 = vshrl.u32 2131351028, %v1218
    %v1225 = vor.u32 %v1223, %v1224
    %v1226 = vshll.u32 2131351028, %v1217
    %v1227 = vshrl.u32 2102212464, %v1218
    %v1228 = vor.u32 %v1226, %v1227
    %v1229 = vshll.u32 2102212464, %v1217
    %v1230 = vshrl.u32 920167782, %v1218
    %v1231 = vor.u32 %v1229, %v1230
    %v1232 = vshll.u32 920167782, %v1217
    %v1233 = vshrl.u32 1326507024, %v1218
    %v1234 = vor.u32 %v1232, %v1233
    %vm1235 = vcmp.lt.s32.totalorder %v1216, 1
    %vm1236 = vcmp.lt.s32.totalorder %v1216, 2
    %vm1237 = vcmp.lt.s32.totalorder %v1216, 3
    %vm1238 = vcmp.lt.s32.totalorder %v1216, 4
    %v1239 = vsel %vm1235, %v1219, %v1222
    %v1240 = vsel %vm1238, %v1228, 2102212464
    %v1241 = vsel %vm1237, %v1225, %v1240
    %v1242 = vsel %vm1236, %v1239, %v1241
    %v1243 = vsel %vm1235, %v1222, %v1225
    %v1244 = vsel %vm1238, %v1231, 920167782
    %v1245 = vsel %vm1237, %v1228, %v1244
    %v1246 = vsel %vm1236, %v1243, %v1245
    %v1247 = vsel %vm1235, %v1225, %v1228
    %v1248 = vsel %vm1238, %v1234, 1326507024
    %v1249 = vsel %vm1237, %v1231, %v1248
    %v1250 = vsel %vm1236, %v1247, %v1249
    %v1251 = vshll.u32 %v1211, 8
    %v1252 = vand.u32 %v1251, 65535
    %v1253 = vshrl.u32 %v1251, 16
    %v1254 = vand.u32 %v1250, 65535
    %v1255 = vshrl.u32 %v1250, 16
    %v1256 = vmul.u32 %v1252, %v1254
    %v1257 = vmul.u32 %v1252, %v1255
    %v1258 = vmul.u32 %v1253, %v1254
    %v1259 = vmul.u32 %v1253, %v1255
    %v1260 = vshll.u32 %v1257, 16
    %v1261 = vshrl.u32 %v1257, 16
    %v1262 = vshll.u32 %v1258, 16
    %v1263 = vshrl.u32 %v1258, 16
    %vm1264 = vc.u32 %v1256, %v1260
    %v1265 = vsel %vm1264, 1, 0
    %v1266 = vadd.s32 %v1256, %v1260
    %v1267 = vadd.s32 %v1259, %v1265
    %vm1268 = vc.u32 %v1266, %v1262
    %v1269 = vsel %vm1268, 1, 0
    %v1270 = vadd.s32 %v1266, %v1262
    %v1271 = vadd.s32 %v1267, %v1269
    %v1272 = vadd.s32 %v1271, %v1261
    %v1273 = vadd.s32 %v1272, %v1263
    %v1274 = vand.u32 %v1251, 65535
    %v1275 = vshrl.u32 %v1251, 16
    %v1276 = vand.u32 %v1246, 65535
    %v1277 = vshrl.u32 %v1246, 16
    %v1278 = vmul.u32 %v1274, %v1276
    %v1279 = vmul.u32 %v1274, %v1277
    %v1280 = vmul.u32 %v1275, %v1276
    %v1281 = vmul.u32 %v1275, %v1277
    %v1282 = vshll.u32 %v1279, 16
    %v1283 = vshrl.u32 %v1279, 16
    %v1284 = vshll.u32 %v1280, 16
    %v1285 = vshrl.u32 %v1280, 16
    %vm1286 = vc.u32 %v1278, %v1282
    %v1287 = vsel %vm1286, 1, 0
    %v1288 = vadd.s32 %v1278, %v1282
    %v1289 = vadd.s32 %v1281, %v1287
    %vm1290 = vc.u32 %v1288, %v1284
    %v1291 = vsel %vm1290, 1, 0
    %v1292 = vadd.s32 %v1288, %v1284
    %v1293 = vadd.s32 %v1289, %v1291
    %v1294 = vadd.s32 %v1293, %v1283
    %v1295 = vadd.s32 %v1294, %v1285
    %v1296 = vmul.u32 %v1251, %v1242
    %v1297 = vadd.s32 %v1273, %v1292
    %vm1298 = vc.u32 %v1273, %v1292
    %v1299 = vadd.s32 %v1295, 1
    %v1300 = vsel %vm1298, %v1299, %v1295
    %v1301 = vadd.s32 %v1296, %v1300
    %v1302 = vadd.s32 %v1301, 536870912
    %v1303 = vshrl.u32 %v1302, 30
    %v1304 = vshll.u32 %v1303, 30
    %v1305 = vsub.s32 %v1301, %v1304
    %vm1306 = vcmp.lt.s32.totalorder %v1305, 0
    %v1307 = vsub.s32 0, %v1305
    %v1308 = vsel %vm1306, %v1307, %v1305
    %v1309 = vclz %v1308
    %v1310 = vsub.s32 %v1309, 2
    %vm1311 = vcmp.gt.s32.totalorder 0, %v1310
    %v1312 = vsel %vm1311, 0, %v1310
    %v1313 = vsub.s32 32, %v1312
    %v1314 = vshll.u32 %v1305, %v1312
    %v1315 = vshrl.u32 %v1297, %v1313
    %v1316 = vor.u32 %v1314, %v1315
    %v1317 = vsub.s32 4294967266, %v1312
    %v1318 = vadd.s32 %v1317, 127
    %v1319 = vshll.u32 %v1318, 23
    %v1320 = vor.u32 4788187, %v1319
    %v1321 = vand.u32 2147483647, %v1320
    %v1323 = vcvt.s32.f32 %v1316
    %v1324 = vmul.f32 %v1323, %v1321
    %v1325 = vxor.u32 %v1324, 2147483648
    %v1326 = vsel %vm1205, %v1325, %v1324
    %v1327 = vsub.s32 4, %v1303
    %v1328 = vsel %vm1205, %v1327, %v1303
    %v1329 = vsel %vm1204, %v109, %v1326
    %v1330 = vsel %vm1204, 0, %v1328
    %v1331 = vmul.f32 %v1329, %v1329
    %v1332 = vmul.f32 %v1331, -0.001358992
    %v1333 = vadd.f32 %v1332, 0.041655596
    %v1334 = vmul.f32 %v1331, %v1333
    %v1335 = vadd.f32 %v1334, -0.4999988
    %v1336 = vmul.f32 %v1331, %v1335
    %v1337 = vadd.f32 1.0, %v1336
    %v1338 = vmul.f32 %v1329, %v1329
    %v1339 = vmul.f32 %v1338, -0.00019511016
    %v1340 = vadd.f32 %v1339, 0.008332121
    %v1341 = vmul.f32 %v1338, %v1340
    %v1342 = vadd.f32 %v1341, -0.16666654
    %v1343 = vmul.f32 %v1338, %v1342
    %v1344 = vadd.f32 %v1343, 1.0
    %v1345 = vmul.f32 %v1344, %v1329
    %vm1346 = vweird.f32 %v109
    %v1347 = vadd.s32 %v1330, 3
    %v1348 = vand.u32 %v1347, 3
    %vm1349 = vcmp.lt.s32.totalorder %v1348, 2
    %vm1350 = vcmp.eq.s32.totalorder %v1348, 0
    %v1351 = vxor.u32 %v1345, 2147483648
    %v1352 = vsel %vm1350, %v1337, %v1351
    %vm1353 = vcmp.eq.s32.totalorder %v1348, 2
    %v1354 = vxor.u32 %v1337, 2147483648
    %v1355 = vsel %vm1353, %v1354, %v1345
    %v1356 = vsel %vm1349, %v1352, %v1355
    %v1357 = vsel %vm1346, nan, %v1356
    %v1358 = vand.u32 2147483647, %v110
    %vm1359 = vcmp.le.f32.partialorder %v1358, 0.7853982
    %vm1360 = vcmp.lt.s32.totalorder %v110, 0
    %v1361 = vand.u32 %v110, 2139095040
    %v1362 = vshrl.u32 %v1361, 23
    %v1363 = vsub.s32 %v1362, 127
    %v1364 = vand.u32 2147483647, %v110
    %v1365 = vand.u32 %v1364, 8388607
    %v1366 = vor.u32 %v1365, 8388608
    %v1367 = vsub.s32 0, %v1366
    %v1368 = vadd.s32 %v1363, 1
    %vm1369 = vcmp.gt.s32.totalorder %v1368, 0
    %v1370 = vsel %vm1369, %v1368, 0
    %v1371 = vshrl.u32 %v1370, 5
    %v1372 = vand.u32 %v1370, 31
    %v1373 = vsub.s32 32, %v1372
    %v1374 = vshrl.u32 683565275, %v1373
    %v1375 = vshll.u32 683565275, %v1372
    %v1376 = vshrl.u32 2475754826, %v1373
    %v1377 = vor.u32 %v1375, %v1376
    %v1378 = vshll.u32 2475754826, %v1372
    %v1379 = vshrl.u32 2131351028, %v1373
    %v1380 = vor.u32 %v1378, %v1379
    %v1381 = vshll.u32 2131351028, %v1372
    %v1382 = vshrl.u32 2102212464, %v1373
    %v1383 = vor.u32 %v1381, %v1382
    %v1384 = vshll.u32 2102212464, %v1372
    %v1385 = vshrl.u32 920167782, %v1373
    %v1386 = vor.u32 %v1384, %v1385
    %v1387 = vshll.u32 920167782, %v1372
    %v1388 = vshrl.u32 1326507024, %v1373
    %v1389 = vor.u32 %v1387, %v1388
    %vm1390 = vcmp.lt.s32.totalorder %v1371, 1
    %vm1391 = vcmp.lt.s32.totalorder %v1371, 2
    %vm1392 = vcmp.lt.s32.totalorder %v1371, 3
    %vm1393 = vcmp.lt.s32.totalorder %v1371, 4
    %v1394 = vsel %vm1390, %v1374, %v1377
    %v1395 = vsel %vm1393, %v1383, 2102212464
    %v1396 = vsel %vm1392, %v1380, %v1395
    %v1397 = vsel %vm1391, %v1394, %v1396
    %v1398 = vsel %vm1390, %v1377, %v1380
    %v1399 = vsel %vm1393, %v1386, 920167782
    %v1400 = vsel %vm1392, %v1383, %v1399
    %v1401 = vsel %vm1391, %v1398, %v1400
    %v1402 = vsel %vm1390, %v1380, %v1383
    %v1403 = vsel %vm1393, %v1389, 1326507024
    %v1404 = vsel %vm1392, %v1386, %v1403
    %v1405 = vsel %vm1391, %v1402, %v1404
    %v1406 = vshll.u32 %v1366, 8
    %v1407 = vand.u32 %v1406, 65535
    %v1408 = vshrl.u32 %v1406, 16
    %v1409 = vand.u32 %v1405, 65535
    %v1410 = vshrl.u32 %v1405, 16
    %v1411 = vmul.u32 %v1407, %v1409
    %v1412 = vmul.u32 %v1407, %v1410
    %v1413 = vmul.u32 %v1408, %v1409
    %v1414 = vmul.u32 %v1408, %v1410
    %v1415 = vshll.u32 %v1412, 16
    %v1416 = vshrl.u32 %v1412, 16
    %v1417 = vshll.u32 %v1413, 16
    %v1418 = vshrl.u32 %v1413, 16
    %vm1419 = vc.u32 %v1411, %v1415
    %v1420 = vsel %vm1419, 1, 0
    %v1421 = vadd.s32 %v1411, %v1415
    %v1422 = vadd.s32 %v1414, %v1420
    %vm1423 = vc.u32 %v1421, %v1417
    %v1424 = vsel %vm1423, 1, 0
    %v1425 = vadd.s32 %v1421, %v1417
    %v1426 = vadd.s32 %v1422, %v1424
    %v1427 = vadd.s32 %v1426, %v1416
    %v1428 = vadd.s32 %v1427, %v1418
    %v1429 = vand.u32 %v1406, 65535
    %v1430 = vshrl.u32 %v1406, 16
    %v1431 = vand.u32 %v1401, 65535
    %v1432 = vshrl.u32 %v1401, 16
    %v1433 = vmul.u32 %v1429, %v1431
    %v1434 = vmul.u32 %v1429, %v1432
    %v1435 = vmul.u32 %v1430, %v1431
    %v1436 = vmul.u32 %v1430, %v1432
    %v1437 = vshll.u32 %v1434, 16
    %v1438 = vshrl.u32 %v1434, 16
    %v1439 = vshll.u32 %v1435, 16
    %v1440 = vshrl.u32 %v1435, 16
    %vm1441 = vc.u32 %v1433, %v1437
    %v1442 = vsel %vm1441, 1, 0
    %v1443 = vadd.s32 %v1433, %v1437
    %v1444 = vadd.s32 %v1436, %v1442
    %vm1445 = vc.u32 %v1443, %v1439
    %v1446 = vsel %vm1445, 1, 0
    %v1447 = vadd.s32 %v1443, %v1439
    %v1448 = vadd.s32 %v1444, %v1446
    %v1449 = vadd.s32 %v1448, %v1438
    %v1450 = vadd.s32 %v1449, %v1440
    %v1451 = vmul.u32 %v1406, %v1397
    %v1452 = vadd.s32 %v1428, %v1447
    %vm1453 = vc.u32 %v1428, %v1447
    %v1454 = vadd.s32 %v1450, 1
    %v1455 = vsel %vm1453, %v1454, %v1450
    %v1456 = vadd.s32 %v1451, %v1455
    %v1457 = vadd.s32 %v1456, 536870912
    %v1458 = vshrl.u32 %v1457, 30
    %v1459 = vshll.u32 %v1458, 30
    %v1460 = vsub.s32 %v1456, %v1459
    %vm1461 = vcmp.lt.s32.totalorder %v1460, 0
    %v1462 = vsub.s32 0, %v1460
    %v1463 = vsel %vm1461, %v1462, %v1460
    %v1464 = vclz %v1463
    %v1465 = vsub.s32 %v1464, 2
    %vm1466 = vcmp.gt.s32.totalorder 0, %v1465
    %v1467 = vsel %vm1466, 0, %v1465
    %v1468 = vsub.s32 32, %v1467
    %v1469 = vshll.u32 %v1460, %v1467
    %v1470 = vshrl.u32 %v1452, %v1468
    %v1471 = vor.u32 %v1469, %v1470
    %v1472 = vsub.s32 4294967266, %v1467
    %v1473 = vadd.s32 %v1472, 127
    %v1474 = vshll.u32 %v1473, 23
    %v1475 = vor.u32 4788187, %v1474
    %v1476 = vand.u32 2147483647, %v1475
    %v1478 = vcvt.s32.f32 %v1471
    %v1479 = vmul.f32 %v1478, %v1476
    %v1480 = vxor.u32 %v1479, 2147483648
    %v1481 = vsel %vm1360, %v1480, %v1479
    %v1482 = vsub.s32 4, %v1458
    %v1483 = vsel %vm1360, %v1482, %v1458
    %v1484 = vsel %vm1359, %v110, %v1481
    %v1485 = vsel %vm1359, 0, %v1483
    %v1486 = vmul.f32 %v1484, %v1484
    %v1487 = vmul.f32 %v1486, -0.001358992
    %v1488 = vadd.f32 %v1487, 0.041655596
    %v1489 = vmul.f32 %v1486, %v1488
    %v1490 = vadd.f32 %v1489, -0.4999988
    %v1491 = vmul.f32 %v1486, %v1490
    %v1492 = vadd.f32 1.0, %v1491
    %v1493 = vmul.f32 %v1484, %v1484
    %v1494 = vmul.f32 %v1493, -0.00019511016
    %v1495 = vadd.f32 %v1494, 0.008332121
    %v1496 = vmul.f32 %v1493, %v1495
    %v1497 = vadd.f32 %v1496, -0.16666654
    %v1498 = vmul.f32 %v1493, %v1497
    %v1499 = vadd.f32 %v1498, 1.0
    %v1500 = vmul.f32 %v1499, %v1484
    %vm1501 = vweird.f32 %v110
    %v1502 = vadd.s32 %v1485, 3
    %v1503 = vand.u32 %v1502, 3
    %vm1504 = vcmp.lt.s32.totalorder %v1503, 2
    %vm1505 = vcmp.eq.s32.totalorder %v1503, 0
    %v1506 = vxor.u32 %v1500, 2147483648
    %v1507 = vsel %vm1505, %v1492, %v1506
    %vm1508 = vcmp.eq.s32.totalorder %v1503, 2
    %v1509 = vxor.u32 %v1492, 2147483648
    %v1510 = vsel %vm1508, %v1509, %v1500
    %v1511 = vsel %vm1504, %v1507, %v1510
    %v1512 = vsel %vm1501, nan, %v1511
    %v1513 = vand.u32 2147483647, %v111
    %vm1514 = vcmp.le.f32.partialorder %v1513, 0.7853982
    %vm1515 = vcmp.lt.s32.totalorder %v111, 0
    %v1516 = vand.u32 %v111, 2139095040
    %v1517 = vshrl.u32 %v1516, 23
    %v1518 = vsub.s32 %v1517, 127
    %v1519 = vand.u32 2147483647, %v111
    %v1520 = vand.u32 %v1519, 8388607
    %v1521 = vor.u32 %v1520, 8388608
    %v1522 = vsub.s32 0, %v1521
    %v1523 = vadd.s32 %v1518, 1
    %vm1524 = vcmp.gt.s32.totalorder %v1523, 0
    %v1525 = vsel %vm1524, %v1523, 0
    %v1526 = vshrl.u32 %v1525, 5
    %v1527 = vand.u32 %v1525, 31
    %v1528 = vsub.s32 32, %v1527
    %v1529 = vshrl.u32 683565275, %v1528
    %v1530 = vshll.u32 683565275, %v1527
    %v1531 = vshrl.u32 2475754826, %v1528
    %v1532 = vor.u32 %v1530, %v1531
    %v1533 = vshll.u32 2475754826, %v1527
    %v1534 = vshrl.u32 2131351028, %v1528
    %v1535 = vor.u32 %v1533, %v1534
    %v1536 = vshll.u32 2131351028, %v1527
    %v1537 = vshrl.u32 2102212464, %v1528
    %v1538 = vor.u32 %v1536, %v1537
    %v1539 = vshll.u32 2102212464, %v1527
    %v1540 = vshrl.u32 920167782, %v1528
    %v1541 = vor.u32 %v1539, %v1540
    %v1542 = vshll.u32 920167782, %v1527
    %v1543 = vshrl.u32 1326507024, %v1528
    %v1544 = vor.u32 %v1542, %v1543
    %vm1545 = vcmp.lt.s32.totalorder %v1526, 1
    %vm1546 = vcmp.lt.s32.totalorder %v1526, 2
    %vm1547 = vcmp.lt.s32.totalorder %v1526, 3
    %vm1548 = vcmp.lt.s32.totalorder %v1526, 4
    %v1549 = vsel %vm1545, %v1529, %v1532
    %v1550 = vsel %vm1548, %v1538, 2102212464
    %v1551 = vsel %vm1547, %v1535, %v1550
    %v1552 = vsel %vm1546, %v1549, %v1551
    %v1553 = vsel %vm1545, %v1532, %v1535
    %v1554 = vsel %vm1548, %v1541, 920167782
    %v1555 = vsel %vm1547, %v1538, %v1554
    %v1556 = vsel %vm1546, %v1553, %v1555
    %v1557 = vsel %vm1545, %v1535, %v1538
    %v1558 = vsel %vm1548, %v1544, 1326507024
    %v1559 = vsel %vm1547, %v1541, %v1558
    %v1560 = vsel %vm1546, %v1557, %v1559
    %v1561 = vshll.u32 %v1521, 8
    %v1562 = vand.u32 %v1561, 65535
    %v1563 = vshrl.u32 %v1561, 16
    %v1564 = vand.u32 %v1560, 65535
    %v1565 = vshrl.u32 %v1560, 16
    %v1566 = vmul.u32 %v1562, %v1564
    %v1567 = vmul.u32 %v1562, %v1565
    %v1568 = vmul.u32 %v1563, %v1564
    %v1569 = vmul.u32 %v1563, %v1565
    %v1570 = vshll.u32 %v1567, 16
    %v1571 = vshrl.u32 %v1567, 16
    %v1572 = vshll.u32 %v1568, 16
    %v1573 = vshrl.u32 %v1568, 16
    %vm1574 = vc.u32 %v1566, %v1570
    %v1575 = vsel %vm1574, 1, 0
    %v1576 = vadd.s32 %v1566, %v1570
    %v1577 = vadd.s32 %v1569, %v1575
    %vm1578 = vc.u32 %v1576, %v1572
    %v1579 = vsel %vm1578, 1, 0
    %v1580 = vadd.s32 %v1576, %v1572
    %v1581 = vadd.s32 %v1577, %v1579
    %v1582 = vadd.s32 %v1581, %v1571
    %v1583 = vadd.s32 %v1582, %v1573
    %v1584 = vand.u32 %v1561, 65535
    %v1585 = vshrl.u32 %v1561, 16
    %v1586 = vand.u32 %v1556, 65535
    %v1587 = vshrl.u32 %v1556, 16
    %v1588 = vmul.u32 %v1584, %v1586
    %v1589 = vmul.u32 %v1584, %v1587
    %v1590 = vmul.u32 %v1585, %v1586
    %v1591 = vmul.u32 %v1585, %v1587
    %v1592 = vshll.u32 %v1589, 16
    %v1593 = vshrl.u32 %v1589, 16
    %v1594 = vshll.u32 %v1590, 16
    %v1595 = vshrl.u32 %v1590, 16
    %vm1596 = vc.u32 %v1588, %v1592
    %v1597 = vsel %vm1596, 1, 0
    %v1598 = vadd.s32 %v1588, %v1592
    %v1599 = vadd.s32 %v1591, %v1597
    %vm1600 = vc.u32 %v1598, %v1594
    %v1601 = vsel %vm1600, 1, 0
    %v1602 = vadd.s32 %v1598, %v1594
    %v1603 = vadd.s32 %v1599, %v1601
    %v1604 = vadd.s32 %v1603, %v1593
    %v1605 = vadd.s32 %v1604, %v1595
    %v1606 = vmul.u32 %v1561, %v1552
    %v1607 = vadd.s32 %v1583, %v1602
    %vm1608 = vc.u32 %v1583, %v1602
    %v1609 = vadd.s32 %v1605, 1
    %v1610 = vsel %vm1608, %v1609, %v1605
    %v1611 = vadd.s32 %v1606, %v1610
    %v1612 = vadd.s32 %v1611, 536870912
    %v1613 = vshrl.u32 %v1612, 30
    %v1614 = vshll.u32 %v1613, 30
    %v1615 = vsub.s32 %v1611, %v1614
    %vm1616 = vcmp.lt.s32.totalorder %v1615, 0
    %v1617 = vsub.s32 0, %v1615
    %v1618 = vsel %vm1616, %v1617, %v1615
    %v1619 = vclz %v1618
    %v1620 = vsub.s32 %v1619, 2
    %vm1621 = vcmp.gt.s32.totalorder 0, %v1620
    %v1622 = vsel %vm1621, 0, %v1620
    %v1623 = vsub.s32 32, %v1622
    %v1624 = vshll.u32 %v1615, %v1622
    %v1625 = vshrl.u32 %v1607, %v1623
    %v1626 = vor.u32 %v1624, %v1625
    %v1627 = vsub.s32 4294967266, %v1622
    %v1628 = vadd.s32 %v1627, 127
    %v1629 = vshll.u32 %v1628, 23
    %v1630 = vor.u32 4788187, %v1629
    %v1631 = vand.u32 2147483647, %v1630
    %v1633 = vcvt.s32.f32 %v1626
    %v1634 = vmul.f32 %v1633, %v1631
    %v1635 = vxor.u32 %v1634, 2147483648
    %v1636 = vsel %vm1515, %v1635, %v1634
    %v1637 = vsub.s32 4, %v1613
    %v1638 = vsel %vm1515, %v1637, %v1613
    %v1639 = vsel %vm1514, %v111, %v1636
    %v1640 = vsel %vm1514, 0, %v1638
    %v1641 = vmul.f32 %v1639, %v1639
    %v1642 = vmul.f32 %v1641, -0.001358992
    %v1643 = vadd.f32 %v1642, 0.041655596
    %v1644 = vmul.f32 %v1641, %v1643
    %v1645 = vadd.f32 %v1644, -0.4999988
    %v1646 = vmul.f32 %v1641, %v1645
    %v1647 = vadd.f32 1.0, %v1646
    %v1648 = vmul.f32 %v1639, %v1639
    %v1649 = vmul.f32 %v1648, -0.00019511016
    %v1650 = vadd.f32 %v1649, 0.008332121
    %v1651 = vmul.f32 %v1648, %v1650
    %v1652 = vadd.f32 %v1651, -0.16666654
    %v1653 = vmul.f32 %v1648, %v1652
    %v1654 = vadd.f32 %v1653, 1.0
    %v1655 = vmul.f32 %v1654, %v1639
    %vm1656 = vweird.f32 %v111
    %v1657 = vadd.s32 %v1640, 3
    %v1658 = vand.u32 %v1657, 3
    %vm1659 = vcmp.lt.s32.totalorder %v1658, 2
    %vm1660 = vcmp.eq.s32.totalorder %v1658, 0
    %v1661 = vxor.u32 %v1655, 2147483648
    %v1662 = vsel %vm1660, %v1647, %v1661
    %vm1663 = vcmp.eq.s32.totalorder %v1658, 2
    %v1664 = vxor.u32 %v1647, 2147483648
    %v1665 = vsel %vm1663, %v1664, %v1655
    %v1666 = vsel %vm1659, %v1662, %v1665
    %v1667 = vsel %vm1656, nan, %v1666
    %v1668 = vand.u32 2147483647, %v112
    %vm1669 = vcmp.le.f32.partialorder %v1668, 0.7853982
    %vm1670 = vcmp.lt.s32.totalorder %v112, 0
    %v1671 = vand.u32 %v112, 2139095040
    %v1672 = vshrl.u32 %v1671, 23
    %v1673 = vsub.s32 %v1672, 127
    %v1674 = vand.u32 2147483647, %v112
    %v1675 = vand.u32 %v1674, 8388607
    %v1676 = vor.u32 %v1675, 8388608
    %v1677 = vsub.s32 0, %v1676
    %v1678 = vadd.s32 %v1673, 1
    %vm1679 = vcmp.gt.s32.totalorder %v1678, 0
    %v1680 = vsel %vm1679, %v1678, 0
    %v1681 = vshrl.u32 %v1680, 5
    %v1682 = vand.u32 %v1680, 31
    %v1683 = vsub.s32 32, %v1682
    %v1684 = vshrl.u32 683565275, %v1683
    %v1685 = vshll.u32 683565275, %v1682
    %v1686 = vshrl.u32 2475754826, %v1683
    %v1687 = vor.u32 %v1685, %v1686
    %v1688 = vshll.u32 2475754826, %v1682
    %v1689 = vshrl.u32 2131351028, %v1683
    %v1690 = vor.u32 %v1688, %v1689
    %v1691 = vshll.u32 2131351028, %v1682
    %v1692 = vshrl.u32 2102212464, %v1683
    %v1693 = vor.u32 %v1691, %v1692
    %v1694 = vshll.u32 2102212464, %v1682
    %v1695 = vshrl.u32 920167782, %v1683
    %v1696 = vor.u32 %v1694, %v1695
    %v1697 = vshll.u32 920167782, %v1682
    %v1698 = vshrl.u32 1326507024, %v1683
    %v1699 = vor.u32 %v1697, %v1698
    %vm1700 = vcmp.lt.s32.totalorder %v1681, 1
    %vm1701 = vcmp.lt.s32.totalorder %v1681, 2
    %vm1702 = vcmp.lt.s32.totalorder %v1681, 3
    %vm1703 = vcmp.lt.s32.totalorder %v1681, 4
    %v1704 = vsel %vm1700, %v1684, %v1687
    %v1705 = vsel %vm1703, %v1693, 2102212464
    %v1706 = vsel %vm1702, %v1690, %v1705
    %v1707 = vsel %vm1701, %v1704, %v1706
    %v1708 = vsel %vm1700, %v1687, %v1690
    %v1709 = vsel %vm1703, %v1696, 920167782
    %v1710 = vsel %vm1702, %v1693, %v1709
    %v1711 = vsel %vm1701, %v1708, %v1710
    %v1712 = vsel %vm1700, %v1690, %v1693
    %v1713 = vsel %vm1703, %v1699, 1326507024
    %v1714 = vsel %vm1702, %v1696, %v1713
    %v1715 = vsel %vm1701, %v1712, %v1714
    %v1716 = vshll.u32 %v1676, 8
    %v1717 = vand.u32 %v1716, 65535
    %v1718 = vshrl.u32 %v1716, 16
    %v1719 = vand.u32 %v1715, 65535
    %v1720 = vshrl.u32 %v1715, 16
    %v1721 = vmul.u32 %v1717, %v1719
    %v1722 = vmul.u32 %v1717, %v1720
    %v1723 = vmul.u32 %v1718, %v1719
    %v1724 = vmul.u32 %v1718, %v1720
    %v1725 = vshll.u32 %v1722, 16
    %v1726 = vshrl.u32 %v1722, 16
    %v1727 = vshll.u32 %v1723, 16
    %v1728 = vshrl.u32 %v1723, 16
    %vm1729 = vc.u32 %v1721, %v1725
    %v1730 = vsel %vm1729, 1, 0
    %v1731 = vadd.s32 %v1721, %v1725
    %v1732 = vadd.s32 %v1724, %v1730
    %vm1733 = vc.u32 %v1731, %v1727
    %v1734 = vsel %vm1733, 1, 0
    %v1735 = vadd.s32 %v1731, %v1727
    %v1736 = vadd.s32 %v1732, %v1734
    %v1737 = vadd.s32 %v1736, %v1726
    %v1738 = vadd.s32 %v1737, %v1728
    %v1739 = vand.u32 %v1716, 65535
    %v1740 = vshrl.u32 %v1716, 16
    %v1741 = vand.u32 %v1711, 65535
    %v1742 = vshrl.u32 %v1711, 16
    %v1743 = vmul.u32 %v1739, %v1741
    %v1744 = vmul.u32 %v1739, %v1742
    %v1745 = vmul.u32 %v1740, %v1741
    %v1746 = vmul.u32 %v1740, %v1742
    %v1747 = vshll.u32 %v1744, 16
    %v1748 = vshrl.u32 %v1744, 16
    %v1749 = vshll.u32 %v1745, 16
    %v1750 = vshrl.u32 %v1745, 16
    %vm1751 = vc.u32 %v1743, %v1747
    %v1752 = vsel %vm1751, 1, 0
    %v1753 = vadd.s32 %v1743, %v1747
    %v1754 = vadd.s32 %v1746, %v1752
    %vm1755 = vc.u32 %v1753, %v1749
    %v1756 = vsel %vm1755, 1, 0
    %v1757 = vadd.s32 %v1753, %v1749
    %v1758 = vadd.s32 %v1754, %v1756
    %v1759 = vadd.s32 %v1758, %v1748
    %v1760 = vadd.s32 %v1759, %v1750
    %v1761 = vmul.u32 %v1716, %v1707
    %v1762 = vadd.s32 %v1738, %v1757
    %vm1763 = vc.u32 %v1738, %v1757
    %v1764 = vadd.s32 %v1760, 1
    %v1765 = vsel %vm1763, %v1764, %v1760
    %v1766 = vadd.s32 %v1761, %v1765
    %v1767 = vadd.s32 %v1766, 536870912
    %v1768 = vshrl.u32 %v1767, 30
    %v1769 = vshll.u32 %v1768, 30
    %v1770 = vsub.s32 %v1766, %v1769
    %vm1771 = vcmp.lt.s32.totalorder %v1770, 0
    %v1772 = vsub.s32 0, %v1770
    %v1773 = vsel %vm1771, %v1772, %v1770
    %v1774 = vclz %v1773
    %v1775 = vsub.s32 %v1774, 2
    %vm1776 = vcmp.gt.s32.totalorder 0, %v1775
    %v1777 = vsel %vm1776, 0, %v1775
    %v1778 = vsub.s32 32, %v1777
    %v1779 = vshll.u32 %v1770, %v1777
    %v1780 = vshrl.u32 %v1762, %v1778
    %v1781 = vor.u32 %v1779, %v1780
    %v1782 = vsub.s32 4294967266, %v1777
    %v1783 = vadd.s32 %v1782, 127
    %v1784 = vshll.u32 %v1783, 23
    %v1785 = vor.u32 4788187, %v1784
    %v1786 = vand.u32 2147483647, %v1785
    %v1788 = vcvt.s32.f32 %v1781
    %v1789 = vmul.f32 %v1788, %v1786
    %v1790 = vxor.u32 %v1789, 2147483648
    %v1791 = vsel %vm1670, %v1790, %v1789
    %v1792 = vsub.s32 4, %v1768
    %v1793 = vsel %vm1670, %v1792, %v1768
    %v1794 = vsel %vm1669, %v112, %v1791
    %v1795 = vsel %vm1669, 0, %v1793
    %v1796 = vmul.f32 %v1794, %v1794
    %v1797 = vmul.f32 %v1796, -0.001358992
    %v1798 = vadd.f32 %v1797, 0.041655596
    %v1799 = vmul.f32 %v1796, %v1798
    %v1800 = vadd.f32 %v1799, -0.4999988
    %v1801 = vmul.f32 %v1796, %v1800
    %v1802 = vadd.f32 1.0, %v1801
    %v1803 = vmul.f32 %v1794, %v1794
    %v1804 = vmul.f32 %v1803, -0.00019511016
    %v1805 = vadd.f32 %v1804, 0.008332121
    %v1806 = vmul.f32 %v1803, %v1805
    %v1807 = vadd.f32 %v1806, -0.16666654
    %v1808 = vmul.f32 %v1803, %v1807
    %v1809 = vadd.f32 %v1808, 1.0
    %v1810 = vmul.f32 %v1809, %v1794
    %vm1811 = vweird.f32 %v112
    %v1812 = vadd.s32 %v1795, 3
    %v1813 = vand.u32 %v1812, 3
    %vm1814 = vcmp.lt.s32.totalorder %v1813, 2
    %vm1815 = vcmp.eq.s32.totalorder %v1813, 0
    %v1816 = vxor.u32 %v1810, 2147483648
    %v1817 = vsel %vm1815, %v1802, %v1816
    %vm1818 = vcmp.eq.s32.totalorder %v1813, 2
    %v1819 = vxor.u32 %v1802, 2147483648
    %v1820 = vsel %vm1818, %v1819, %v1810
    %v1821 = vsel %vm1814, %v1817, %v1820
    %v1822 = vsel %vm1811, nan, %v1821
    %v1823 = vand.u32 2147483647, %v113
    %vm1824 = vcmp.le.f32.partialorder %v1823, 0.7853982
    %vm1825 = vcmp.lt.s32.totalorder %v113, 0
    %v1826 = vand.u32 %v113, 2139095040
    %v1827 = vshrl.u32 %v1826, 23
    %v1828 = vsub.s32 %v1827, 127
    %v1829 = vand.u32 2147483647, %v113
    %v1830 = vand.u32 %v1829, 8388607
    %v1831 = vor.u32 %v1830, 8388608
    %v1832 = vsub.s32 0, %v1831
    %v1833 = vadd.s32 %v1828, 1
    %vm1834 = vcmp.gt.s32.totalorder %v1833, 0
    %v1835 = vsel %vm1834, %v1833, 0
    %v1836 = vshrl.u32 %v1835, 5
    %v1837 = vand.u32 %v1835, 31
    %v1838 = vsub.s32 32, %v1837
    %v1839 = vshrl.u32 683565275, %v1838
    %v1840 = vshll.u32 683565275, %v1837
    %v1841 = vshrl.u32 2475754826, %v1838
    %v1842 = vor.u32 %v1840, %v1841
    %v1843 = vshll.u32 2475754826, %v1837
    %v1844 = vshrl.u32 2131351028, %v1838
    %v1845 = vor.u32 %v1843, %v1844
    %v1846 = vshll.u32 2131351028, %v1837
    %v1847 = vshrl.u32 2102212464, %v1838
    %v1848 = vor.u32 %v1846, %v1847
    %v1849 = vshll.u32 2102212464, %v1837
    %v1850 = vshrl.u32 920167782, %v1838
    %v1851 = vor.u32 %v1849, %v1850
    %v1852 = vshll.u32 920167782, %v1837
    %v1853 = vshrl.u32 1326507024, %v1838
    %v1854 = vor.u32 %v1852, %v1853
    %vm1855 = vcmp.lt.s32.totalorder %v1836, 1
    %vm1856 = vcmp.lt.s32.totalorder %v1836, 2
    %vm1857 = vcmp.lt.s32.totalorder %v1836, 3
    %vm1858 = vcmp.lt.s32.totalorder %v1836, 4
    %v1859 = vsel %vm1855, %v1839, %v1842
    %v1860 = vsel %vm1858, %v1848, 2102212464
    %v1861 = vsel %vm1857, %v1845, %v1860
    %v1862 = vsel %vm1856, %v1859, %v1861
    %v1863 = vsel %vm1855, %v1842, %v1845
    %v1864 = vsel %vm1858, %v1851, 920167782
    %v1865 = vsel %vm1857, %v1848, %v1864
    %v1866 = vsel %vm1856, %v1863, %v1865
    %v1867 = vsel %vm1855, %v1845, %v1848
    %v1868 = vsel %vm1858, %v1854, 1326507024
    %v1869 = vsel %vm1857, %v1851, %v1868
    %v1870 = vsel %vm1856, %v1867, %v1869
    %v1871 = vshll.u32 %v1831, 8
    %v1872 = vand.u32 %v1871, 65535
    %v1873 = vshrl.u32 %v1871, 16
    %v1874 = vand.u32 %v1870, 65535
    %v1875 = vshrl.u32 %v1870, 16
    %v1876 = vmul.u32 %v1872, %v1874
    %v1877 = vmul.u32 %v1872, %v1875
    %v1878 = vmul.u32 %v1873, %v1874
    %v1879 = vmul.u32 %v1873, %v1875
    %v1880 = vshll.u32 %v1877, 16
    %v1881 = vshrl.u32 %v1877, 16
    %v1882 = vshll.u32 %v1878, 16
    %v1883 = vshrl.u32 %v1878, 16
    %vm1884 = vc.u32 %v1876, %v1880
    %v1885 = vsel %vm1884, 1, 0
    %v1886 = vadd.s32 %v1876, %v1880
    %v1887 = vadd.s32 %v1879, %v1885
    %vm1888 = vc.u32 %v1886, %v1882
    %v1889 = vsel %vm1888, 1, 0
    %v1890 = vadd.s32 %v1886, %v1882
    %v1891 = vadd.s32 %v1887, %v1889
    %v1892 = vadd.s32 %v1891, %v1881
    %v1893 = vadd.s32 %v1892, %v1883
    %v1894 = vand.u32 %v1871, 65535
    %v1895 = vshrl.u32 %v1871, 16
    %v1896 = vand.u32 %v1866, 65535
    %v1897 = vshrl.u32 %v1866, 16
    %v1898 = vmul.u32 %v1894, %v1896
    %v1899 = vmul.u32 %v1894, %v1897
    %v1900 = vmul.u32 %v1895, %v1896
    %v1901 = vmul.u32 %v1895, %v1897
    %v1902 = vshll.u32 %v1899, 16
    %v1903 = vshrl.u32 %v1899, 16
    %v1904 = vshll.u32 %v1900, 16
    %v1905 = vshrl.u32 %v1900, 16
    %vm1906 = vc.u32 %v1898, %v1902
    %v1907 = vsel %vm1906, 1, 0
    %v1908 = vadd.s32 %v1898, %v1902
    %v1909 = vadd.s32 %v1901, %v1907
    %vm1910 = vc.u32 %v1908, %v1904
    %v1911 = vsel %vm1910, 1, 0
    %v1912 = vadd.s32 %v1908, %v1904
    %v1913 = vadd.s32 %v1909, %v1911
    %v1914 = vadd.s32 %v1913, %v1903
    %v1915 = vadd.s32 %v1914, %v1905
    %v1916 = vmul.u32 %v1871, %v1862
    %v1917 = vadd.s32 %v1893, %v1912
    %vm1918 = vc.u32 %v1893, %v1912
    %v1919 = vadd.s32 %v1915, 1
    %v1920 = vsel %vm1918, %v1919, %v1915
    %v1921 = vadd.s32 %v1916, %v1920
    %v1922 = vadd.s32 %v1921, 536870912
    %v1923 = vshrl.u32 %v1922, 30
    %v1924 = vshll.u32 %v1923, 30
    %v1925 = vsub.s32 %v1921, %v1924
    %vm1926 = vcmp.lt.s32.totalorder %v1925, 0
    %v1927 = vsub.s32 0, %v1925
    %v1928 = vsel %vm1926, %v1927, %v1925
    %v1929 = vclz %v1928
    %v1930 = vsub.s32 %v1929, 2
    %vm1931 = vcmp.gt.s32.totalorder 0, %v1930
    %v1932 = vsel %vm1931, 0, %v1930
    %v1933 = vsub.s32 32, %v1932
    %v1934 = vshll.u32 %v1925, %v1932
    %v1935 = vshrl.u32 %v1917, %v1933
    %v1936 = vor.u32 %v1934, %v1935
    %v1937 = vsub.s32 4294967266, %v1932
    %v1938 = vadd.s32 %v1937, 127
    %v1939 = vshll.u32 %v1938, 23
    %v1940 = vor.u32 4788187, %v1939
    %v1941 = vand.u32 2147483647, %v1940
    %v1943 = vcvt.s32.f32 %v1936
    %v1944 = vmul.f32 %v1943, %v1941
    %v1945 = vxor.u32 %v1944, 2147483648
    %v1946 = vsel %vm1825, %v1945, %v1944
    %v1947 = vsub.s32 4, %v1923
    %v1948 = vsel %vm1825, %v1947, %v1923
    %v1949 = vsel %vm1824, %v113, %v1946
    %v1950 = vsel %vm1824, 0, %v1948
    %v1951 = vmul.f32 %v1949, %v1949
    %v1952 = vmul.f32 %v1951, -0.001358992
    %v1953 = vadd.f32 %v1952, 0.041655596
    %v1954 = vmul.f32 %v1951, %v1953
    %v1955 = vadd.f32 %v1954, -0.4999988
    %v1956 = vmul.f32 %v1951, %v1955
    %v1957 = vadd.f32 1.0, %v1956
    %v1958 = vmul.f32 %v1949, %v1949
    %v1959 = vmul.f32 %v1958, -0.00019511016
    %v1960 = vadd.f32 %v1959, 0.008332121
    %v1961 = vmul.f32 %v1958, %v1960
    %v1962 = vadd.f32 %v1961, -0.16666654
    %v1963 = vmul.f32 %v1958, %v1962
    %v1964 = vadd.f32 %v1963, 1.0
    %v1965 = vmul.f32 %v1964, %v1949
    %vm1966 = vweird.f32 %v113
    %v1967 = vadd.s32 %v1950, 3
    %v1968 = vand.u32 %v1967, 3
    %vm1969 = vcmp.lt.s32.totalorder %v1968, 2
    %vm1970 = vcmp.eq.s32.totalorder %v1968, 0
    %v1971 = vxor.u32 %v1965, 2147483648
    %v1972 = vsel %vm1970, %v1957, %v1971
    %vm1973 = vcmp.eq.s32.totalorder %v1968, 2
    %v1974 = vxor.u32 %v1957, 2147483648
    %v1975 = vsel %vm1973, %v1974, %v1965
    %v1976 = vsel %vm1969, %v1972, %v1975
    %v1977 = vsel %vm1966, nan, %v1976
    %v1978 = vand.u32 2147483647, %v114
    %vm1979 = vcmp.le.f32.partialorder %v1978, 0.7853982
    %vm1980 = vcmp.lt.s32.totalorder %v114, 0
    %v1981 = vand.u32 %v114, 2139095040
    %v1982 = vshrl.u32 %v1981, 23
    %v1983 = vsub.s32 %v1982, 127
    %v1984 = vand.u32 2147483647, %v114
    %v1985 = vand.u32 %v1984, 8388607
    %v1986 = vor.u32 %v1985, 8388608
    %v1987 = vsub.s32 0, %v1986
    %v1988 = vadd.s32 %v1983, 1
    %vm1989 = vcmp.gt.s32.totalorder %v1988, 0
    %v1990 = vsel %vm1989, %v1988, 0
    %v1991 = vshrl.u32 %v1990, 5
    %v1992 = vand.u32 %v1990, 31
    %v1993 = vsub.s32 32, %v1992
    %v1994 = vshrl.u32 683565275, %v1993
    %v1995 = vshll.u32 683565275, %v1992
    %v1996 = vshrl.u32 2475754826, %v1993
    %v1997 = vor.u32 %v1995, %v1996
    %v1998 = vshll.u32 2475754826, %v1992
    %v1999 = vshrl.u32 2131351028, %v1993
    %v2000 = vor.u32 %v1998, %v1999
    %v2001 = vshll.u32 2131351028, %v1992
    %v2002 = vshrl.u32 2102212464, %v1993
    %v2003 = vor.u32 %v2001, %v2002
    %v2004 = vshll.u32 2102212464, %v1992
    %v2005 = vshrl.u32 920167782, %v1993
    %v2006 = vor.u32 %v2004, %v2005
    %v2007 = vshll.u32 920167782, %v1992
    %v2008 = vshrl.u32 1326507024, %v1993
    %v2009 = vor.u32 %v2007, %v2008
    %vm2010 = vcmp.lt.s32.totalorder %v1991, 1
    %vm2011 = vcmp.lt.s32.totalorder %v1991, 2
    %vm2012 = vcmp.lt.s32.totalorder %v1991, 3
    %vm2013 = vcmp.lt.s32.totalorder %v1991, 4
    %v2014 = vsel %vm2010, %v1994, %v1997
    %v2015 = vsel %vm2013, %v2003, 2102212464
    %v2016 = vsel %vm2012, %v2000, %v2015
    %v2017 = vsel %vm2011, %v2014, %v2016
    %v2018 = vsel %vm2010, %v1997, %v2000
    %v2019 = vsel %vm2013, %v2006, 920167782
    %v2020 = vsel %vm2012, %v2003, %v2019
    %v2021 = vsel %vm2011, %v2018, %v2020
    %v2022 = vsel %vm2010, %v2000, %v2003
    %v2023 = vsel %vm2013, %v2009, 1326507024
    %v2024 = vsel %vm2012, %v2006, %v2023
    %v2025 = vsel %vm2011, %v2022, %v2024
    %v2026 = vshll.u32 %v1986, 8
    %v2027 = vand.u32 %v2026, 65535
    %v2028 = vshrl.u32 %v2026, 16
    %v2029 = vand.u32 %v2025, 65535
    %v2030 = vshrl.u32 %v2025, 16
    %v2031 = vmul.u32 %v2027, %v2029
    %v2032 = vmul.u32 %v2027, %v2030
    %v2033 = vmul.u32 %v2028, %v2029
    %v2034 = vmul.u32 %v2028, %v2030
    %v2035 = vshll.u32 %v2032, 16
    %v2036 = vshrl.u32 %v2032, 16
    %v2037 = vshll.u32 %v2033, 16
    %v2038 = vshrl.u32 %v2033, 16
    %vm2039 = vc.u32 %v2031, %v2035
    %v2040 = vsel %vm2039, 1, 0
    %v2041 = vadd.s32 %v2031, %v2035
    %v2042 = vadd.s32 %v2034, %v2040
    %vm2043 = vc.u32 %v2041, %v2037
    %v2044 = vsel %vm2043, 1, 0
    %v2045 = vadd.s32 %v2041, %v2037
    %v2046 = vadd.s32 %v2042, %v2044
    %v2047 = vadd.s32 %v2046, %v2036
    %v2048 = vadd.s32 %v2047, %v2038
    %v2049 = vand.u32 %v2026, 65535
    %v2050 = vshrl.u32 %v2026, 16
    %v2051 = vand.u32 %v2021, 65535
    %v2052 = vshrl.u32 %v2021, 16
    %v2053 = vmul.u32 %v2049, %v2051
    %v2054 = vmul.u32 %v2049, %v2052
    %v2055 = vmul.u32 %v2050, %v2051
    %v2056 = vmul.u32 %v2050, %v2052
    %v2057 = vshll.u32 %v2054, 16
    %v2058 = vshrl.u32 %v2054, 16
    %v2059 = vshll.u32 %v2055, 16
    %v2060 = vshrl.u32 %v2055, 16
    %vm2061 = vc.u32 %v2053, %v2057
    %v2062 = vsel %vm2061, 1, 0
    %v2063 = vadd.s32 %v2053, %v2057
    %v2064 = vadd.s32 %v2056, %v2062
    %vm2065 = vc.u32 %v2063, %v2059
    %v2066 = vsel %vm2065, 1, 0
    %v2067 = vadd.s32 %v2063, %v2059
    %v2068 = vadd.s32 %v2064, %v2066
    %v2069 = vadd.s32 %v2068, %v2058
    %v2070 = vadd.s32 %v2069, %v2060
    %v2071 = vmul.u32 %v2026, %v2017
    %v2072 = vadd.s32 %v2048, %v2067
    %vm2073 = vc.u32 %v2048, %v2067
    %v2074 = vadd.s32 %v2070, 1
    %v2075 = vsel %vm2073, %v2074, %v2070
    %v2076 = vadd.s32 %v2071, %v2075
    %v2077 = vadd.s32 %v2076, 536870912
    %v2078 = vshrl.u32 %v2077, 30
    %v2079 = vshll.u32 %v2078, 30
    %v2080 = vsub.s32 %v2076, %v2079
    %vm2081 = vcmp.lt.s32.totalorder %v2080, 0
    %v2082 = vsub.s32 0, %v2080
    %v2083 = vsel %vm2081, %v2082, %v2080
    %v2084 = vclz %v2083
    %v2085 = vsub.s32 %v2084, 2
    %vm2086 = vcmp.gt.s32.totalorder 0, %v2085
    %v2087 = vsel %vm2086, 0, %v2085
    %v2088 = vsub.s32 32, %v2087
    %v2089 = vshll.u32 %v2080, %v2087
    %v2090 = vshrl.u32 %v2072, %v2088
    %v2091 = vor.u32 %v2089, %v2090
    %v2092 = vsub.s32 4294967266, %v2087
    %v2093 = vadd.s32 %v2092, 127
    %v2094 = vshll.u32 %v2093, 23
    %v2095 = vor.u32 4788187, %v2094
    %v2096 = vand.u32 2147483647, %v2095
    %v2098 = vcvt.s32.f32 %v2091
    %v2099 = vmul.f32 %v2098, %v2096
    %v2100 = vxor.u32 %v2099, 2147483648
    %v2101 = vsel %vm1980, %v2100, %v2099
    %v2102 = vsub.s32 4, %v2078
    %v2103 = vsel %vm1980, %v2102, %v2078
    %v2104 = vsel %vm1979, %v114, %v2101
    %v2105 = vsel %vm1979, 0, %v2103
    %v2106 = vmul.f32 %v2104, %v2104
    %v2107 = vmul.f32 %v2106, -0.001358992
    %v2108 = vadd.f32 %v2107, 0.041655596
    %v2109 = vmul.f32 %v2106, %v2108
    %v2110 = vadd.f32 %v2109, -0.4999988
    %v2111 = vmul.f32 %v2106, %v2110
    %v2112 = vadd.f32 1.0, %v2111
    %v2113 = vmul.f32 %v2104, %v2104
    %v2114 = vmul.f32 %v2113, -0.00019511016
    %v2115 = vadd.f32 %v2114, 0.008332121
    %v2116 = vmul.f32 %v2113, %v2115
    %v2117 = vadd.f32 %v2116, -0.16666654
    %v2118 = vmul.f32 %v2113, %v2117
    %v2119 = vadd.f32 %v2118, 1.0
    %v2120 = vmul.f32 %v2119, %v2104
    %vm2121 = vweird.f32 %v114
    %v2122 = vadd.s32 %v2105, 3
    %v2123 = vand.u32 %v2122, 3
    %vm2124 = vcmp.lt.s32.totalorder %v2123, 2
    %vm2125 = vcmp.eq.s32.totalorder %v2123, 0
    %v2126 = vxor.u32 %v2120, 2147483648
    %v2127 = vsel %vm2125, %v2112, %v2126
    %vm2128 = vcmp.eq.s32.totalorder %v2123, 2
    %v2129 = vxor.u32 %v2112, 2147483648
    %v2130 = vsel %vm2128, %v2129, %v2120
    %v2131 = vsel %vm2124, %v2127, %v2130
    %v2132 = vsel %vm2121, nan, %v2131
    %v2133 = vand.u32 2147483647, %v115
    %vm2134 = vcmp.le.f32.partialorder %v2133, 0.7853982
    %vm2135 = vcmp.lt.s32.totalorder %v115, 0
    %v2136 = vand.u32 %v115, 2139095040
    %v2137 = vshrl.u32 %v2136, 23
    %v2138 = vsub.s32 %v2137, 127
    %v2139 = vand.u32 2147483647, %v115
    %v2140 = vand.u32 %v2139, 8388607
    %v2141 = vor.u32 %v2140, 8388608
    %v2142 = vsub.s32 0, %v2141
    %v2143 = vadd.s32 %v2138, 1
    %vm2144 = vcmp.gt.s32.totalorder %v2143, 0
    %v2145 = vsel %vm2144, %v2143, 0
    %v2146 = vshrl.u32 %v2145, 5
    %v2147 = vand.u32 %v2145, 31
    %v2148 = vsub.s32 32, %v2147
    %v2149 = vshrl.u32 683565275, %v2148
    %v2150 = vshll.u32 683565275, %v2147
    %v2151 = vshrl.u32 2475754826, %v2148
    %v2152 = vor.u32 %v2150, %v2151
    %v2153 = vshll.u32 2475754826, %v2147
    %v2154 = vshrl.u32 2131351028, %v2148
    %v2155 = vor.u32 %v2153, %v2154
    %v2156 = vshll.u32 2131351028, %v2147
    %v2157 = vshrl.u32 2102212464, %v2148
    %v2158 = vor.u32 %v2156, %v2157
    %v2159 = vshll.u32 2102212464, %v2147
    %v2160 = vshrl.u32 920167782, %v2148
    %v2161 = vor.u32 %v2159, %v2160
    %v2162 = vshll.u32 920167782, %v2147
    %v2163 = vshrl.u32 1326507024, %v2148
    %v2164 = vor.u32 %v2162, %v2163
    %vm2165 = vcmp.lt.s32.totalorder %v2146, 1
    %vm2166 = vcmp.lt.s32.totalorder %v2146, 2
    %vm2167 = vcmp.lt.s32.totalorder %v2146, 3
    %vm2168 = vcmp.lt.s32.totalorder %v2146, 4
    %v2169 = vsel %vm2165, %v2149, %v2152
    %v2170 = vsel %vm2168, %v2158, 2102212464
    %v2171 = vsel %vm2167, %v2155, %v2170
    %v2172 = vsel %vm2166, %v2169, %v2171
    %v2173 = vsel %vm2165, %v2152, %v2155
    %v2174 = vsel %vm2168, %v2161, 920167782
    %v2175 = vsel %vm2167, %v2158, %v2174
    %v2176 = vsel %vm2166, %v2173, %v2175
    %v2177 = vsel %vm2165, %v2155, %v2158
    %v2178 = vsel %vm2168, %v2164, 1326507024
    %v2179 = vsel %vm2167, %v2161, %v2178
    %v2180 = vsel %vm2166, %v2177, %v2179
    %v2181 = vshll.u32 %v2141, 8
    %v2182 = vand.u32 %v2181, 65535
    %v2183 = vshrl.u32 %v2181, 16
    %v2184 = vand.u32 %v2180, 65535
    %v2185 = vshrl.u32 %v2180, 16
    %v2186 = vmul.u32 %v2182, %v2184
    %v2187 = vmul.u32 %v2182, %v2185
    %v2188 = vmul.u32 %v2183, %v2184
    %v2189 = vmul.u32 %v2183, %v2185
    %v2190 = vshll.u32 %v2187, 16
    %v2191 = vshrl.u32 %v2187, 16
    %v2192 = vshll.u32 %v2188, 16
    %v2193 = vshrl.u32 %v2188, 16
    %vm2194 = vc.u32 %v2186, %v2190
    %v2195 = vsel %vm2194, 1, 0
    %v2196 = vadd.s32 %v2186, %v2190
    %v2197 = vadd.s32 %v2189, %v2195
    %vm2198 = vc.u32 %v2196, %v2192
    %v2199 = vsel %vm2198, 1, 0
    %v2200 = vadd.s32 %v2196, %v2192
    %v2201 = vadd.s32 %v2197, %v2199
    %v2202 = vadd.s32 %v2201, %v2191
    %v2203 = vadd.s32 %v2202, %v2193
    %v2204 = vand.u32 %v2181, 65535
    %v2205 = vshrl.u32 %v2181, 16
    %v2206 = vand.u32 %v2176, 65535
    %v2207 = vshrl.u32 %v2176, 16
    %v2208 = vmul.u32 %v2204, %v2206
    %v2209 = vmul.u32 %v2204, %v2207
    %v2210 = vmul.u32 %v2205, %v2206
    %v2211 = vmul.u32 %v2205, %v2207
    %v2212 = vshll.u32 %v2209, 16
    %v2213 = vshrl.u32 %v2209, 16
    %v2214 = vshll.u32 %v2210, 16
    %v2215 = vshrl.u32 %v2210, 16
    %vm2216 = vc.u32 %v2208, %v2212
    %v2217 = vsel %vm2216, 1, 0
    %v2218 = vadd.s32 %v2208, %v2212
    %v2219 = vadd.s32 %v2211, %v2217
    %vm2220 = vc.u32 %v2218, %v2214
    %v2221 = vsel %vm2220, 1, 0
    %v2222 = vadd.s32 %v2218, %v2214
    %v2223 = vadd.s32 %v2219, %v2221
    %v2224 = vadd.s32 %v2223, %v2213
    %v2225 = vadd.s32 %v2224, %v2215
    %v2226 = vmul.u32 %v2181, %v2172
    %v2227 = vadd.s32 %v2203, %v2222
    %vm2228 = vc.u32 %v2203, %v2222
    %v2229 = vadd.s32 %v2225, 1
    %v2230 = vsel %vm2228, %v2229, %v2225
    %v2231 = vadd.s32 %v2226, %v2230
    %v2232 = vadd.s32 %v2231, 536870912
    %v2233 = vshrl.u32 %v2232, 30
    %v2234 = vshll.u32 %v2233, 30
    %v2235 = vsub.s32 %v2231, %v2234
    %vm2236 = vcmp.lt.s32.totalorder %v2235, 0
    %v2237 = vsub.s32 0, %v2235
    %v2238 = vsel %vm2236, %v2237, %v2235
    %v2239 = vclz %v2238
    %v2240 = vsub.s32 %v2239, 2
    %vm2241 = vcmp.gt.s32.totalorder 0, %v2240
    %v2242 = vsel %vm2241, 0, %v2240
    %v2243 = vsub.s32 32, %v2242
    %v2244 = vshll.u32 %v2235, %v2242
    %v2245 = vshrl.u32 %v2227, %v2243
    %v2246 = vor.u32 %v2244, %v2245
    %v2247 = vsub.s32 4294967266, %v2242
    %v2248 = vadd.s32 %v2247, 127
    %v2249 = vshll.u32 %v2248, 23
    %v2250 = vor.u32 4788187, %v2249
    %v2251 = vand.u32 2147483647, %v2250
    %v2253 = vcvt.s32.f32 %v2246
    %v2254 = vmul.f32 %v2253, %v2251
    %v2255 = vxor.u32 %v2254, 2147483648
    %v2256 = vsel %vm2135, %v2255, %v2254
    %v2257 = vsub.s32 4, %v2233
    %v2258 = vsel %vm2135, %v2257, %v2233
    %v2259 = vsel %vm2134, %v115, %v2256
    %v2260 = vsel %vm2134, 0, %v2258
    %v2261 = vmul.f32 %v2259, %v2259
    %v2262 = vmul.f32 %v2261, -0.001358992
    %v2263 = vadd.f32 %v2262, 0.041655596
    %v2264 = vmul.f32 %v2261, %v2263
    %v2265 = vadd.f32 %v2264, -0.4999988
    %v2266 = vmul.f32 %v2261, %v2265
    %v2267 = vadd.f32 1.0, %v2266
    %v2268 = vmul.f32 %v2259, %v2259
    %v2269 = vmul.f32 %v2268, -0.00019511016
    %v2270 = vadd.f32 %v2269, 0.008332121
    %v2271 = vmul.f32 %v2268, %v2270
    %v2272 = vadd.f32 %v2271, -0.16666654
    %v2273 = vmul.f32 %v2268, %v2272
    %v2274 = vadd.f32 %v2273, 1.0
    %v2275 = vmul.f32 %v2274, %v2259
    %vm2276 = vweird.f32 %v115
    %v2277 = vadd.s32 %v2260, 3
    %v2278 = vand.u32 %v2277, 3
    %vm2279 = vcmp.lt.s32.totalorder %v2278, 2
    %vm2280 = vcmp.eq.s32.totalorder %v2278, 0
    %v2281 = vxor.u32 %v2275, 2147483648
    %v2282 = vsel %vm2280, %v2267, %v2281
    %vm2283 = vcmp.eq.s32.totalorder %v2278, 2
    %v2284 = vxor.u32 %v2267, 2147483648
    %v2285 = vsel %vm2283, %v2284, %v2275
    %v2286 = vsel %vm2279, %v2282, %v2285
    %v2287 = vsel %vm2276, nan, %v2286
    %v2288 = vand.u32 2147483647, %v116
    %vm2289 = vcmp.le.f32.partialorder %v2288, 0.7853982
    %vm2290 = vcmp.lt.s32.totalorder %v116, 0
    %v2291 = vand.u32 %v116, 2139095040
    %v2292 = vshrl.u32 %v2291, 23
    %v2293 = vsub.s32 %v2292, 127
    %v2294 = vand.u32 2147483647, %v116
    %v2295 = vand.u32 %v2294, 8388607
    %v2296 = vor.u32 %v2295, 8388608
    %v2297 = vsub.s32 0, %v2296
    %v2298 = vadd.s32 %v2293, 1
    %vm2299 = vcmp.gt.s32.totalorder %v2298, 0
    %v2300 = vsel %vm2299, %v2298, 0
    %v2301 = vshrl.u32 %v2300, 5
    %v2302 = vand.u32 %v2300, 31
    %v2303 = vsub.s32 32, %v2302
    %v2304 = vshrl.u32 683565275, %v2303
    %v2305 = vshll.u32 683565275, %v2302
    %v2306 = vshrl.u32 2475754826, %v2303
    %v2307 = vor.u32 %v2305, %v2306
    %v2308 = vshll.u32 2475754826, %v2302
    %v2309 = vshrl.u32 2131351028, %v2303
    %v2310 = vor.u32 %v2308, %v2309
    %v2311 = vshll.u32 2131351028, %v2302
    %v2312 = vshrl.u32 2102212464, %v2303
    %v2313 = vor.u32 %v2311, %v2312
    %v2314 = vshll.u32 2102212464, %v2302
    %v2315 = vshrl.u32 920167782, %v2303
    %v2316 = vor.u32 %v2314, %v2315
    %v2317 = vshll.u32 920167782, %v2302
    %v2318 = vshrl.u32 1326507024, %v2303
    %v2319 = vor.u32 %v2317, %v2318
    %vm2320 = vcmp.lt.s32.totalorder %v2301, 1
    %vm2321 = vcmp.lt.s32.totalorder %v2301, 2
    %vm2322 = vcmp.lt.s32.totalorder %v2301, 3
    %vm2323 = vcmp.lt.s32.totalorder %v2301, 4
    %v2324 = vsel %vm2320, %v2304, %v2307
    %v2325 = vsel %vm2323, %v2313, 2102212464
    %v2326 = vsel %vm2322, %v2310, %v2325
    %v2327 = vsel %vm2321, %v2324, %v2326
    %v2328 = vsel %vm2320, %v2307, %v2310
    %v2329 = vsel %vm2323, %v2316, 920167782
    %v2330 = vsel %vm2322, %v2313, %v2329
    %v2331 = vsel %vm2321, %v2328, %v2330
    %v2332 = vsel %vm2320, %v2310, %v2313
    %v2333 = vsel %vm2323, %v2319, 1326507024
    %v2334 = vsel %vm2322, %v2316, %v2333
    %v2335 = vsel %vm2321, %v2332, %v2334
    %v2336 = vshll.u32 %v2296, 8
    %v2337 = vand.u32 %v2336, 65535
    %v2338 = vshrl.u32 %v2336, 16
    %v2339 = vand.u32 %v2335, 65535
    %v2340 = vshrl.u32 %v2335, 16
    %v2341 = vmul.u32 %v2337, %v2339
    %v2342 = vmul.u32 %v2337, %v2340
    %v2343 = vmul.u32 %v2338, %v2339
    %v2344 = vmul.u32 %v2338, %v2340
    %v2345 = vshll.u32 %v2342, 16
    %v2346 = vshrl.u32 %v2342, 16
    %v2347 = vshll.u32 %v2343, 16
    %v2348 = vshrl.u32 %v2343, 16
    %vm2349 = vc.u32 %v2341, %v2345
    %v2350 = vsel %vm2349, 1, 0
    %v2351 = vadd.s32 %v2341, %v2345
    %v2352 = vadd.s32 %v2344, %v2350
    %vm2353 = vc.u32 %v2351, %v2347
    %v2354 = vsel %vm2353, 1, 0
    %v2355 = vadd.s32 %v2351, %v2347
    %v2356 = vadd.s32 %v2352, %v2354
    %v2357 = vadd.s32 %v2356, %v2346
    %v2358 = vadd.s32 %v2357, %v2348
    %v2359 = vand.u32 %v2336, 65535
    %v2360 = vshrl.u32 %v2336, 16
    %v2361 = vand.u32 %v2331, 65535
    %v2362 = vshrl.u32 %v2331, 16
    %v2363 = vmul.u32 %v2359, %v2361
    %v2364 = vmul.u32 %v2359, %v2362
    %v2365 = vmul.u32 %v2360, %v2361
    %v2366 = vmul.u32 %v2360, %v2362
    %v2367 = vshll.u32 %v2364, 16
    %v2368 = vshrl.u32 %v2364, 16
    %v2369 = vshll.u32 %v2365, 16
    %v2370 = vshrl.u32 %v2365, 16
    %vm2371 = vc.u32 %v2363, %v2367
    %v2372 = vsel %vm2371, 1, 0
    %v2373 = vadd.s32 %v2363, %v2367
    %v2374 = vadd.s32 %v2366, %v2372
    %vm2375 = vc.u32 %v2373, %v2369
    %v2376 = vsel %vm2375, 1, 0
    %v2377 = vadd.s32 %v2373, %v2369
    %v2378 = vadd.s32 %v2374, %v2376
    %v2379 = vadd.s32 %v2378, %v2368
    %v2380 = vadd.s32 %v2379, %v2370
    %v2381 = vmul.u32 %v2336, %v2327
    %v2382 = vadd.s32 %v2358, %v2377
    %vm2383 = vc.u32 %v2358, %v2377
    %v2384 = vadd.s32 %v2380, 1
    %v2385 = vsel %vm2383, %v2384, %v2380
    %v2386 = vadd.s32 %v2381, %v2385
    %v2387 = vadd.s32 %v2386, 536870912
    %v2388 = vshrl.u32 %v2387, 30
    %v2389 = vshll.u32 %v2388, 30
    %v2390 = vsub.s32 %v2386, %v2389
    %vm2391 = vcmp.lt.s32.totalorder %v2390, 0
    %v2392 = vsub.s32 0, %v2390
    %v2393 = vsel %vm2391, %v2392, %v2390
    %v2394 = vclz %v2393
    %v2395 = vsub.s32 %v2394, 2
    %vm2396 = vcmp.gt.s32.totalorder 0, %v2395
    %v2397 = vsel %vm2396, 0, %v2395
    %v2398 = vsub.s32 32, %v2397
    %v2399 = vshll.u32 %v2390, %v2397
    %v2400 = vshrl.u32 %v2382, %v2398
    %v2401 = vor.u32 %v2399, %v2400
    %v2402 = vsub.s32 4294967266, %v2397
    %v2403 = vadd.s32 %v2402, 127
    %v2404 = vshll.u32 %v2403, 23
    %v2405 = vor.u32 4788187, %v2404
    %v2406 = vand.u32 2147483647, %v2405
    %v2408 = vcvt.s32.f32 %v2401
    %v2409 = vmul.f32 %v2408, %v2406
    %v2410 = vxor.u32 %v2409, 2147483648
    %v2411 = vsel %vm2290, %v2410, %v2409
    %v2412 = vsub.s32 4, %v2388
    %v2413 = vsel %vm2290, %v2412, %v2388
    %v2414 = vsel %vm2289, %v116, %v2411
    %v2415 = vsel %vm2289, 0, %v2413
    %v2416 = vmul.f32 %v2414, %v2414
    %v2417 = vmul.f32 %v2416, -0.001358992
    %v2418 = vadd.f32 %v2417, 0.041655596
    %v2419 = vmul.f32 %v2416, %v2418
    %v2420 = vadd.f32 %v2419, -0.4999988
    %v2421 = vmul.f32 %v2416, %v2420
    %v2422 = vadd.f32 1.0, %v2421
    %v2423 = vmul.f32 %v2414, %v2414
    %v2424 = vmul.f32 %v2423, -0.00019511016
    %v2425 = vadd.f32 %v2424, 0.008332121
    %v2426 = vmul.f32 %v2423, %v2425
    %v2427 = vadd.f32 %v2426, -0.16666654
    %v2428 = vmul.f32 %v2423, %v2427
    %v2429 = vadd.f32 %v2428, 1.0
    %v2430 = vmul.f32 %v2429, %v2414
    %vm2431 = vweird.f32 %v116
    %v2432 = vadd.s32 %v2415, 3
    %v2433 = vand.u32 %v2432, 3
    %vm2434 = vcmp.lt.s32.totalorder %v2433, 2
    %vm2435 = vcmp.eq.s32.totalorder %v2433, 0
    %v2436 = vxor.u32 %v2430, 2147483648
    %v2437 = vsel %vm2435, %v2422, %v2436
    %vm2438 = vcmp.eq.s32.totalorder %v2433, 2
    %v2439 = vxor.u32 %v2422, 2147483648
    %v2440 = vsel %vm2438, %v2439, %v2430
    %v2441 = vsel %vm2434, %v2437, %v2440
    %v2442 = vsel %vm2431, nan, %v2441
    %v2443 = vand.u32 2147483647, %v117
    %vm2444 = vcmp.le.f32.partialorder %v2443, 0.7853982
    %vm2445 = vcmp.lt.s32.totalorder %v117, 0
    %v2446 = vand.u32 %v117, 2139095040
    %v2447 = vshrl.u32 %v2446, 23
    %v2448 = vsub.s32 %v2447, 127
    %v2449 = vand.u32 2147483647, %v117
    %v2450 = vand.u32 %v2449, 8388607
    %v2451 = vor.u32 %v2450, 8388608
    %v2452 = vsub.s32 0, %v2451
    %v2453 = vadd.s32 %v2448, 1
    %vm2454 = vcmp.gt.s32.totalorder %v2453, 0
    %v2455 = vsel %vm2454, %v2453, 0
    %v2456 = vshrl.u32 %v2455, 5
    %v2457 = vand.u32 %v2455, 31
    %v2458 = vsub.s32 32, %v2457
    %v2459 = vshrl.u32 683565275, %v2458
    %v2460 = vshll.u32 683565275, %v2457
    %v2461 = vshrl.u32 2475754826, %v2458
    %v2462 = vor.u32 %v2460, %v2461
    %v2463 = vshll.u32 2475754826, %v2457
    %v2464 = vshrl.u32 2131351028, %v2458
    %v2465 = vor.u32 %v2463, %v2464
    %v2466 = vshll.u32 2131351028, %v2457
    %v2467 = vshrl.u32 2102212464, %v2458
    %v2468 = vor.u32 %v2466, %v2467
    %v2469 = vshll.u32 2102212464, %v2457
    %v2470 = vshrl.u32 920167782, %v2458
    %v2471 = vor.u32 %v2469, %v2470
    %v2472 = vshll.u32 920167782, %v2457
    %v2473 = vshrl.u32 1326507024, %v2458
    %v2474 = vor.u32 %v2472, %v2473
    %vm2475 = vcmp.lt.s32.totalorder %v2456, 1
    %vm2476 = vcmp.lt.s32.totalorder %v2456, 2
    %vm2477 = vcmp.lt.s32.totalorder %v2456, 3
    %vm2478 = vcmp.lt.s32.totalorder %v2456, 4
    %v2479 = vsel %vm2475, %v2459, %v2462
    %v2480 = vsel %vm2478, %v2468, 2102212464
    %v2481 = vsel %vm2477, %v2465, %v2480
    %v2482 = vsel %vm2476, %v2479, %v2481
    %v2483 = vsel %vm2475, %v2462, %v2465
    %v2484 = vsel %vm2478, %v2471, 920167782
    %v2485 = vsel %vm2477, %v2468, %v2484
    %v2486 = vsel %vm2476, %v2483, %v2485
    %v2487 = vsel %vm2475, %v2465, %v2468
    %v2488 = vsel %vm2478, %v2474, 1326507024
    %v2489 = vsel %vm2477, %v2471, %v2488
    %v2490 = vsel %vm2476, %v2487, %v2489
    %v2491 = vshll.u32 %v2451, 8
    %v2492 = vand.u32 %v2491, 65535
    %v2493 = vshrl.u32 %v2491, 16
    %v2494 = vand.u32 %v2490, 65535
    %v2495 = vshrl.u32 %v2490, 16
    %v2496 = vmul.u32 %v2492, %v2494
    %v2497 = vmul.u32 %v2492, %v2495
    %v2498 = vmul.u32 %v2493, %v2494
    %v2499 = vmul.u32 %v2493, %v2495
    %v2500 = vshll.u32 %v2497, 16
    %v2501 = vshrl.u32 %v2497, 16
    %v2502 = vshll.u32 %v2498, 16
    %v2503 = vshrl.u32 %v2498, 16
    %vm2504 = vc.u32 %v2496, %v2500
    %v2505 = vsel %vm2504, 1, 0
    %v2506 = vadd.s32 %v2496, %v2500
    %v2507 = vadd.s32 %v2499, %v2505
    %vm2508 = vc.u32 %v2506, %v2502
    %v2509 = vsel %vm2508, 1, 0
    %v2510 = vadd.s32 %v2506, %v2502
    %v2511 = vadd.s32 %v2507, %v2509
    %v2512 = vadd.s32 %v2511, %v2501
    %v2513 = vadd.s32 %v2512, %v2503
    %v2514 = vand.u32 %v2491, 65535
    %v2515 = vshrl.u32 %v2491, 16
    %v2516 = vand.u32 %v2486, 65535
    %v2517 = vshrl.u32 %v2486, 16
    %v2518 = vmul.u32 %v2514, %v2516
    %v2519 = vmul.u32 %v2514, %v2517
    %v2520 = vmul.u32 %v2515, %v2516
    %v2521 = vmul.u32 %v2515, %v2517
    %v2522 = vshll.u32 %v2519, 16
    %v2523 = vshrl.u32 %v2519, 16
    %v2524 = vshll.u32 %v2520, 16
    %v2525 = vshrl.u32 %v2520, 16
    %vm2526 = vc.u32 %v2518, %v2522
    %v2527 = vsel %vm2526, 1, 0
    %v2528 = vadd.s32 %v2518, %v2522
    %v2529 = vadd.s32 %v2521, %v2527
    %vm2530 = vc.u32 %v2528, %v2524
    %v2531 = vsel %vm2530, 1, 0
    %v2532 = vadd.s32 %v2528, %v2524
    %v2533 = vadd.s32 %v2529, %v2531
    %v2534 = vadd.s32 %v2533, %v2523
    %v2535 = vadd.s32 %v2534, %v2525
    %v2536 = vmul.u32 %v2491, %v2482
    %v2537 = vadd.s32 %v2513, %v2532
    %vm2538 = vc.u32 %v2513, %v2532
    %v2539 = vadd.s32 %v2535, 1
    %v2540 = vsel %vm2538, %v2539, %v2535
    %v2541 = vadd.s32 %v2536, %v2540
    %v2542 = vadd.s32 %v2541, 536870912
    %v2543 = vshrl.u32 %v2542, 30
    %v2544 = vshll.u32 %v2543, 30
    %v2545 = vsub.s32 %v2541, %v2544
    %vm2546 = vcmp.lt.s32.totalorder %v2545, 0
    %v2547 = vsub.s32 0, %v2545
    %v2548 = vsel %vm2546, %v2547, %v2545
    %v2549 = vclz %v2548
    %v2550 = vsub.s32 %v2549, 2
    %vm2551 = vcmp.gt.s32.totalorder 0, %v2550
    %v2552 = vsel %vm2551, 0, %v2550
    %v2553 = vsub.s32 32, %v2552
    %v2554 = vshll.u32 %v2545, %v2552
    %v2555 = vshrl.u32 %v2537, %v2553
    %v2556 = vor.u32 %v2554, %v2555
    %v2557 = vsub.s32 4294967266, %v2552
    %v2558 = vadd.s32 %v2557, 127
    %v2559 = vshll.u32 %v2558, 23
    %v2560 = vor.u32 4788187, %v2559
    %v2561 = vand.u32 2147483647, %v2560
    %v2563 = vcvt.s32.f32 %v2556
    %v2564 = vmul.f32 %v2563, %v2561
    %v2565 = vxor.u32 %v2564, 2147483648
    %v2566 = vsel %vm2445, %v2565, %v2564
    %v2567 = vsub.s32 4, %v2543
    %v2568 = vsel %vm2445, %v2567, %v2543
    %v2569 = vsel %vm2444, %v117, %v2566
    %v2570 = vsel %vm2444, 0, %v2568
    %v2571 = vmul.f32 %v2569, %v2569
    %v2572 = vmul.f32 %v2571, -0.001358992
    %v2573 = vadd.f32 %v2572, 0.041655596
    %v2574 = vmul.f32 %v2571, %v2573
    %v2575 = vadd.f32 %v2574, -0.4999988
    %v2576 = vmul.f32 %v2571, %v2575
    %v2577 = vadd.f32 1.0, %v2576
    %v2578 = vmul.f32 %v2569, %v2569
    %v2579 = vmul.f32 %v2578, -0.00019511016
    %v2580 = vadd.f32 %v2579, 0.008332121
    %v2581 = vmul.f32 %v2578, %v2580
    %v2582 = vadd.f32 %v2581, -0.16666654
    %v2583 = vmul.f32 %v2578, %v2582
    %v2584 = vadd.f32 %v2583, 1.0
    %v2585 = vmul.f32 %v2584, %v2569
    %vm2586 = vweird.f32 %v117
    %v2587 = vadd.s32 %v2570, 3
    %v2588 = vand.u32 %v2587, 3
    %vm2589 = vcmp.lt.s32.totalorder %v2588, 2
    %vm2590 = vcmp.eq.s32.totalorder %v2588, 0
    %v2591 = vxor.u32 %v2585, 2147483648
    %v2592 = vsel %vm2590, %v2577, %v2591
    %vm2593 = vcmp.eq.s32.totalorder %v2588, 2
    %v2594 = vxor.u32 %v2577, 2147483648
    %v2595 = vsel %vm2593, %v2594, %v2585
    %v2596 = vsel %vm2589, %v2592, %v2595
    %v2597 = vsel %vm2586, nan, %v2596
    %v2598 = vld [vmem:[#allocation2] sm:$0xff]
    %v2599 = vld [vmem:[#allocation2 + $0x8] sm:$0xff]
    %v2600 = vld [vmem:[#allocation2 + $0x10] sm:$0xff]
    %v2601 = vld [vmem:[#allocation2 + $0x18] sm:$0xff]
    %v2602 = vld [vmem:[#allocation2 + $0x20] sm:$0xff]
    %v2603 = vld [vmem:[#allocation2 + $0x28] sm:$0xff]
    %v2604 = vld [vmem:[#allocation2 + $0x30] sm:$0xff]
    %v2605 = vld [vmem:[#allocation2 + $0x38] sm:$0xff]
    %v2606 = vld [vmem:[#allocation2 + $0x40] sm:$0xff]
    %v2607 = vld [vmem:[#allocation2 + $0x48] sm:$0xff]
    %v2608 = vld [vmem:[#allocation2 + $0x50] sm:$0xff]
    %v2609 = vld [vmem:[#allocation2 + $0x58] sm:$0xff]
    %v2610 = vld [vmem:[#allocation2 + $0x60] sm:$0xff]
    %v2611 = vld [vmem:[#allocation2 + $0x68] sm:$0xff]
    %v2612 = vld [vmem:[#allocation2 + $0x70] sm:$0xff]
    %v2613 = vld [vmem:[#allocation2 + $0x78] sm:$0xff]
    %v2614 = vadd.f32 %v2598, %v272
    %v2615 = vadd.f32 %v2599, %v427
    %v2616 = vadd.f32 %v2600, %v582
    %v2617 = vadd.f32 %v2601, %v737
    %v2618 = vadd.f32 %v2602, %v892
    %v2619 = vadd.f32 %v2603, %v1047
    %v2620 = vadd.f32 %v2604, %v1202
    %v2621 = vadd.f32 %v2605, %v1357
    %v2622 = vadd.f32 %v2606, %v1512
    %v2623 = vadd.f32 %v2607, %v1667
    %v2624 = vadd.f32 %v2608, %v1822
    %v2625 = vadd.f32 %v2609, %v1977
    %v2626 = vadd.f32 %v2610, %v2132
    %v2627 = vadd.f32 %v2611, %v2287
    %v2628 = vadd.f32 %v2612, %v2442
    %v2629 = vadd.f32 %v2613, %v2597
    %2630 = vst [vmem:[#allocation5] sm:$0xff] %v2614
    %2631 = vst [vmem:[#allocation5 + $0x8] sm:$0xff] %v2615
    %2632 = vst [vmem:[#allocation5 + $0x10] sm:$0xff] %v2616
    %2633 = vst [vmem:[#allocation5 + $0x18] sm:$0xff] %v2617
    %2634 = vst [vmem:[#allocation5 + $0x20] sm:$0xff] %v2618
    %2635 = vst [vmem:[#allocation5 + $0x28] sm:$0xff] %v2619
    %2636 = vst [vmem:[#allocation5 + $0x30] sm:$0xff] %v2620
    %2637 = vst [vmem:[#allocation5 + $0x38] sm:$0xff] %v2621
    %2638 = vst [vmem:[#allocation5 + $0x40] sm:$0xff] %v2622
    %2639 = vst [vmem:[#allocation5 + $0x48] sm:$0xff] %v2623
    %2640 = vst [vmem:[#allocation5 + $0x50] sm:$0xff] %v2624
    %2641 = vst [vmem:[#allocation5 + $0x58] sm:$0xff] %v2625
    %2642 = vst [vmem:[#allocation5 + $0x60] sm:$0xff] %v2626
    %2643 = vst [vmem:[#allocation5 + $0x68] sm:$0xff] %v2627
    %2644 = vst [vmem:[#allocation5 + $0x70] sm:$0xff] %v2628
    %2645 = vst [vmem:[#allocation5 + $0x78] sm:$0xff] %v2629
    // Predicated region
    $region10: #{tpu_custom_call.1} parent=1 // pred_check
      _
    $region11: #{tpu_custom_call.1} parent=1 // pred_check_branch
      %2647 = sbr.rel (0) target = $region13
    $region12: #{tpu_custom_call.1} parent=1 // pred_region
      %2649 = vsyncadd [#allocation4], 0
      %s2650 = sshll.u32 [#allocation5], 4
      %s2651 = int_to_ptr.vmem [resolvable:$true] %s2650
      %s2652 = sshll.u32 %s1, 4
      %s2653 = int_to_ptr.hbm [resolvable:$true] %s2652
      %2658 = dma.vmem_to_hbm [thread:$0]  %s2651, 2048, %s2653, [#allocation4], 128, 128, 8
    $region13: #{tpu_custom_call.1} parent=1 // pred_fallthru
      _
    // Predicated region
    $region14: #{tpu_custom_call.1} parent=1 // pred_check
      _
    $region15: #{tpu_custom_call.1} parent=1 // pred_check_branch
      %2660 = sbr.rel (0) target = $region17
    $region16: #{tpu_custom_call.1} parent=1 // pred_region
      %2662 = dma.done [#allocation4], 2048
    $region17: #{tpu_custom_call.1} parent=1 // pred_fallthru
      _
    %2663 = vsyncpa [#allocation3], 1
    %2664 = vsyncpa [#allocation4], 1

</llo_original>
